<compile_context>
chip_gen: v7x
topology: tpu7x:2x2x1
jax: 0.10.0
libtpu: 0.0.40
codegen_flags: <defaults>
</compile_context>

<pallas_src>
import jax
import jax.numpy as jnp
from jax.experimental import pallas as pl
from jax.experimental.pallas import tpu as pltpu

BN_EPS = 1e-5


# ----------------------------------------------------------------------------
# Shared in-kernel helper: im2col once -> single big-K matmul on the MXU.
# ----------------------------------------------------------------------------
def _im2col_matmul(xpad_ref, w_ref, H, W):
    """xpad_ref: (H+2, W+2, Cin) bf16 scratch, w_ref: (9*Cin, Cout) bf16.

    Returns (H*W, Cout) f32 accumulator."""
    xpad = xpad_ref[...]                                    # one VMEM load
    taps = [xpad[dy:dy + H, dx:dx + W, :]
            for dy in range(3) for dx in range(3)]
    cols = jnp.concatenate(taps, axis=-1)                   # (H, W, 9*Cin)
    cols = cols.reshape(H * W, cols.shape[-1])              # (H*W, 9*Cin)
    return jnp.dot(cols, w_ref[...],
                   preferred_element_type=jnp.float32)      # (H*W, Cout)


def _stats(acc):
    """Per-block [sum, sum-of-squares] over rows -> (2, C) f32."""
    s1 = jnp.sum(acc, axis=0, keepdims=True)
    s2 = jnp.sum(acc * acc, axis=0, keepdims=True)
    return jnp.concatenate([s1, s2], axis=0)


# ----------------------------------------------------------------------------
# Pass 1: conv1 with fused channel concat + per-image BN stats.
# ----------------------------------------------------------------------------
def _conv1_stats_kernel(x2_ref, x1_ref, w_ref, y_ref, stats_ref, xpad_ref):
    # x2_ref : (1, H, W, C2) bf16   skip connection block
    # x1_ref : (1, H, W, C1) bf16   upsampled decoder block
    # w_ref  : (9*(C2+C1), Cmid) bf16
    # y_ref  : (1, H, W, Cmid) bf16  raw conv1 output (pre-BN)
    # stats  : (1, 2, Cmid) f32      per-image [sum, sumsq]
    # xpad   : (H+2, W+2, C2+C1) bf16 scratch
    _, H, W, _ = x2_ref.shape
    Cmid = w_ref.shape[1]

    # cheap memset every step (correct under megacore grid partitioning),
    # then a single interior store = zero-padding + channel-concat fusion.
    xpad_ref[...] = jnp.zeros_like(xpad_ref)
    xpad_ref[1:H + 1, 1:W + 1, :] = jnp.concatenate(
        [x2_ref[0], x1_ref[0]], axis=-1)

    acc = _im2col_matmul(xpad_ref, w_ref, H, W)             # (H*W, Cmid) f32

    y_ref[0] = acc.reshape(H, W, Cmid).astype(y_ref.dtype)
    stats_ref[0] = _stats(acc)


# ----------------------------------------------------------------------------
# Pass 2: fused BN1+ReLU -> conv2 + per-image BN stats.
# ----------------------------------------------------------------------------
def _bnrelu_conv2_stats_kernel(y1_ref, scale_ref, bias_ref, w_ref,
                               y2_ref, stats_ref, apad_ref):
    # y1_ref : (1, H, W, Cmid) bf16 ; scale/bias : (1, Cmid) f32
    # w_ref  : (9*Cmid, Cout) bf16
    # y2_ref : (1, H, W, Cout) f32  raw conv2 output (pre-BN)
    # stats  : (1, 2, Cout) f32
    # apad   : (H+2, W+2, Cmid) bf16 scratch
    _, H, W, _ = y1_ref.shape
    Cout = w_ref.shape[1]

    a = y1_ref[0].astype(jnp.float32)
    a = jnp.maximum(a * scale_ref[...] + bias_ref[...], 0.0)   # BN1 + ReLU

    apad_ref[...] = jnp.zeros_like(apad_ref)
    apad_ref[1:H + 1, 1:W + 1, :] = a.astype(apad_ref.dtype)

    acc = _im2col_matmul(apad_ref, w_ref, H, W)             # (H*W, Cout) f32

    y2_ref[0] = acc.reshape(H, W, Cout)
    stats_ref[0] = _stats(acc)


# ----------------------------------------------------------------------------
# Pass 3: fused BN2 + ReLU.
# ----------------------------------------------------------------------------
def _bnrelu_out_kernel(y2_ref, scale_ref, bias_ref, out_ref):
    out_ref[0] = jnp.maximum(y2_ref[0] * scale_ref[...] + bias_ref[...], 0.0)


# ----------------------------------------------------------------------------
# Host-side glue: fold batch stats + gamma/beta into (scale, bias).
# ----------------------------------------------------------------------------
def _bn_affine(stats, gamma, beta, count):
    """stats: (N, 2, C) per-image [sum, sumsq]. Biased variance (train mode)."""
    s = jnp.sum(stats[:, 0, :], axis=0)
    ss = jnp.sum(stats[:, 1, :], axis=0)
    mean = s / count
    var = jnp.maximum(ss / count - mean * mean, 0.0)
    scale = gamma * jax.lax.rsqrt(var + BN_EPS)        # (1, C)
    bias = beta - mean * scale                         # (1, C)
    return scale.astype(jnp.float32), bias.astype(jnp.float32)


# ----------------------------------------------------------------------------
# DoubleConv driver (three pallas_calls, grid over batch, parallel semantics).
# ----------------------------------------------------------------------------
def double_conv_pallas(x2, x1, w1, g1, b1, w2, g2, b2):
    """x2: (N,H,W,C2) f32 skip, x1: (N,H,W,C1) f32 upsampled;
       w*: (9, cin, cout) f32; g*/b*: (1, c) f32."""
    N, H, W, C2 = x2.shape
    C1 = x1.shape[-1]
    Cin = C2 + C1
    Cmid = w1.shape[-1]
    Cout = w2.shape[-1]
    count = N * H * W

    x2b = x2.astype(jnp.bfloat16)
    x1b = x1.astype(jnp.bfloat16)
    w1b = w1.reshape(9 * Cin, Cmid).astype(jnp.bfloat16)
    w2b = w2.reshape(9 * Cmid, Cout).astype(jnp.bfloat16)

    cparams = pltpu.CompilerParams(
        dimension_semantics=("parallel",),
        vmem_limit_bytes=32 * 1024 * 1024)

    def full(shape):   # resident (grid-invariant) operand
        return pl.BlockSpec(shape, lambda n, _nd=len(shape): (0,) * _nd)

    def per_img(shape):  # one batch element per grid step
        return pl.BlockSpec((1,) + tuple(shape[1:]),
                            lambda n, _nd=len(shape): (n,) + (0,) * (_nd - 1))

    # ---- pass 1: conv1 (concat fused in-kernel) + stats ----
    y1, st1 = pl.pallas_call(
        _conv1_stats_kernel,
        grid=(N,),
        in_specs=[per_img(x2b.shape), per_img(x1b.shape), full(w1b.shape)],
        out_specs=(per_img((N, H, W, Cmid)), per_img((N, 2, Cmid))),
        out_shape=(jax.ShapeDtypeStruct((N, H, W, Cmid), jnp.bfloat16),
                   jax.ShapeDtypeStruct((N, 2, Cmid), jnp.float32)),
        scratch_shapes=[pltpu.VMEM((H + 2, W + 2, Cin), jnp.bfloat16)],
        compiler_params=cparams,
    )(x2b, x1b, w1b)

    scale1, bias1 = _bn_affine(st1, g1, b1, count)

    # ---- pass 2: BN1+ReLU -> conv2 + stats ----
    y2, st2 = pl.pallas_call(
        _bnrelu_conv2_stats_kernel,
        grid=(N,),
        in_specs=[per_img(y1.shape), full(scale1.shape), full(bias1.shape),
                  full(w2b.shape)],
        out_specs=(per_img((N, H, W, Cout)), per_img((N, 2, Cout))),
        out_shape=(jax.ShapeDtypeStruct((N, H, W, Cout), jnp.float32),
                   jax.ShapeDtypeStruct((N, 2, Cout), jnp.float32)),
        scratch_shapes=[pltpu.VMEM((H + 2, W + 2, Cmid), jnp.bfloat16)],
        compiler_params=cparams,
    )(y1, scale1, bias1, w2b)

    scale2, bias2 = _bn_affine(st2, g2, b2, count)

    # ---- pass 3: BN2 + ReLU ----
    out = pl.pallas_call(
        _bnrelu_out_kernel,
        grid=(N,),
        in_specs=[per_img(y2.shape), full(scale2.shape), full(bias2.shape)],
        out_specs=per_img((N, H, W, Cout)),
        out_shape=jax.ShapeDtypeStruct((N, H, W, Cout), jnp.float32),
        compiler_params=cparams,
    )(y2, scale2, bias2)
    return out


# ----------------------------------------------------------------------------
# JAX glue: bilinear x2 upsample (align_corners=True) + boundary pad.
# ----------------------------------------------------------------------------
def upsample2x_bilinear_align_corners(x):  # NHWC
    N, H, W, C = x.shape
    Ho, Wo = 2 * H, 2 * W
    ys = jnp.arange(Ho, dtype=jnp.float32) * (H - 1) / (Ho - 1)
    xs = jnp.arange(Wo, dtype=jnp.float32) * (W - 1) / (Wo - 1)
    y0 = jnp.floor(ys).astype(jnp.int32)
    y1 = jnp.minimum(y0 + 1, H - 1)
    ty = (ys - y0.astype(jnp.float32))[None, :, None, None]
    x0 = jnp.floor(xs).astype(jnp.int32)
    x1 = jnp.minimum(x0 + 1, W - 1)
    tx = (xs - x0.astype(jnp.float32))[None, None, :, None]
    top, bot = x[:, y0, :, :], x[:, y1, :, :]
    v = top * (1.0 - ty) + bot * ty
    left, right = v[:, :, x0, :], v[:, :, x1, :]
    return left * (1.0 - tx) + right * tx


def up_forward(x1_nchw, x2_nchw, params):
    """Full `Up.forward` (bilinear=True). Inputs/outputs are NCHW."""
    x1 = jnp.transpose(x1_nchw, (0, 2, 3, 1))  # -> NHWC
    x2 = jnp.transpose(x2_nchw, (0, 2, 3, 1))
    x1 = upsample2x_bilinear_align_corners(x1)
    diffY = x2.shape[1] - x1.shape[1]
    diffX = x2.shape[2] - x1.shape[2]
    x1 = jnp.pad(x1, ((0, 0),
                      (diffY // 2, diffY - diffY // 2),
                      (diffX // 2, diffX - diffX // 2),
                      (0, 0)))
    # channel concat (torch.cat([x2, x1], dim=1)) is fused inside the kernel.
    y = double_conv_pallas(x2, x1, params["w1"], params["g1"], params["b1"],
                           params["w2"], params["g2"], params["b2"])
    return jnp.transpose(y, (0, 3, 1, 2))  # -> NCHW


# ----------------------------------------------------------------------------
# Pure-JAX reference (same math, same bf16 MXU inputs / f32 accumulation).
# ----------------------------------------------------------------------------
def _conv_bn_relu_ref(x, w9, g, b):  # x NHWC f32, w9 (9, cin, cout) f32
    cin, cout = w9.shape[1], w9.shape[2]
    w = w9.reshape(3, 3, cin, cout).astype(jnp.bfloat16)
    y = jax.lax.conv_general_dilated(
        x.astype(jnp.bfloat16), w, window_strides=(1, 1), padding="SAME",
        dimension_numbers=("NHWC", "HWIO", "NHWC"),
        preferred_element_type=jnp.float32)
    mean = jnp.mean(y, axis=(0, 1, 2), keepdims=True)
    var = jnp.mean((y - mean) ** 2, axis=(0, 1, 2), keepdims=True)
    y = (y - mean) * jax.lax.rsqrt(var + BN_EPS) * g.reshape(1, 1, 1, -1) \
        + b.reshape(1, 1, 1, -1)
    return jnp.maximum(y, 0.0)


def up_forward_ref(x1_nchw, x2_nchw, params):
    x1 = jnp.transpose(x1_nchw, (0, 2, 3, 1))
    x2 = jnp.transpose(x2_nchw, (0, 2, 3, 1))
    x1 = upsample2x_bilinear_align_corners(x1)
    x = jnp.concatenate([x2, x1], axis=-1)
    y = _conv_bn_relu_ref(x, params["w1"], params["g1"], params["b1"])
    y = _conv_bn_relu_ref(y, params["w2"], params["g2"], params["b2"])
    return jnp.transpose(y, (0, 3, 1, 2))


# ----------------------------------------------------------------------------
# Parameter init (deterministic, mimics nn.Conv2d/nn.BatchNorm2d defaults).
# ----------------------------------------------------------------------------
def init_up_params(key, in_channels, out_channels):
    mid = in_channels // 2
    k1, k2 = jax.random.split(key)
    b1 = 1.0 / jnp.sqrt(in_channels * 9.0)
    b2 = 1.0 / jnp.sqrt(mid * 9.0)
    w1 = jax.random.uniform(k1, (9, in_channels, mid), jnp.float32, -b1, b1)
    w2 = jax.random.uniform(k2, (9, mid, out_channels), jnp.float32, -b2, b2)
    return {
        "w1": w1, "g1": jnp.ones((1, mid), jnp.float32),
        "b1": jnp.zeros((1, mid), jnp.float32),
        "w2": w2, "g2": jnp.ones((1, out_channels), jnp.float32),
        "b2": jnp.zeros((1, out_channels), jnp.float32),
    }


if __name__ == "__main__":
    # Standard UNet convention: x1 and x2 each carry in_channels // 2 channels.
    in_channels, out_channels = 8, 4
    N, H2, W2 = 2, 16, 16
    key = jax.random.PRNGKey(0)
    k_x1, k_x2, k_p = jax.random.split(key, 3)

    x1 = jax.random.normal(k_x1, (N, in_channels // 2, H2 // 2, W2 // 2),
                           jnp.float32)  # decoder feature (coarse)
    x2 = jax.random.normal(k_x2, (N, in_channels // 2, H2, W2),
                           jnp.float32)  # skip connection (fine)
    params = init_up_params(k_p, in_channels, out_channels)

    out = jax.block_until_ready(up_forward(x1, x2, params))
    ref = jax.block_until_ready(up_forward_ref(x1, x2, params))

    assert out.shape == (N, out_channels, H2, W2), out.shape
    assert bool(jnp.all(jnp.isfinite(out)))
    assert bool(jnp.allclose(out, ref, atol=3e-2, rtol=3e-2)), \
        float(jnp.max(jnp.abs(out - ref)))
    print("KERNEL_OK")
</pallas_src>

<mosaic_0001>
module attributes {stable_mosaic.version = 11 : i64} {
  func.func @_conv1_stats_kernel(%arg0: i32, %arg1: memref<1x16x16x4xbf16, #tpu.memory_space<vmem>>, %arg2: memref<1x16x16x4xbf16, #tpu.memory_space<vmem>>, %arg3: memref<72x4xbf16, #tpu.memory_space<vmem>>, %arg4: memref<1x16x16x4xbf16, #tpu.memory_space<vmem>>, %arg5: memref<1x2x4xf32, #tpu.memory_space<vmem>>, %arg6: memref<18x18x8xbf16, #tpu.memory_space<vmem>>) attributes {dimension_semantics = [#tpu.dimension_semantics<parallel>], iteration_bounds = array<i64: 2>, scalar_prefetch = 0 : i64, scratch_operands = 1 : i64, tpu.core_type = #tpu.core_type<tc>, window_params = [{transform_indices = @transform_0, window_bounds = array<i64: 1, 16, 16, 4>}, {transform_indices = @transform_1, window_bounds = array<i64: 1, 16, 16, 4>}, {pipeline_mode = #tpu.pipeline_mode<synchronous>, transform_indices = @transform_2, window_bounds = array<i64: 72, 4>}, {transform_indices = @transform_3, window_bounds = array<i64: 1, 16, 16, 4>}, {transform_indices = @transform_4, window_bounds = array<i64: 1, 2, 4>}]} {
    %cst = arith.constant 0.000000e+00 : bf16
    %0 = vector.broadcast %cst : bf16 to vector<18x18x8xbf16>
    %c0 = arith.constant 0 : index
    %c0_0 = arith.constant 0 : index
    %c0_1 = arith.constant 0 : index
    %1 = vector.load %arg6[%c0, %c0_0, %c0_1] : memref<18x18x8xbf16, #tpu.memory_space<vmem>>, vector<18x18x8xbf16>
    tpu.vector_store %arg6[%c0, %c0_0, %c0_1], %0 {strides = array<i32>} : memref<18x18x8xbf16, #tpu.memory_space<vmem>>, vector<18x18x8xbf16>,
    %c0_2 = arith.constant 0 : index
    %c0_3 = arith.constant 0 : index
    %c0_4 = arith.constant 0 : index
    %c0_5 = arith.constant 0 : index
    %2 = vector.load %arg1[%c0_2, %c0_3, %c0_4, %c0_5] : memref<1x16x16x4xbf16, #tpu.memory_space<vmem>>, vector<1x16x16x4xbf16>
    %3 = vector.shape_cast %2 : vector<1x16x16x4xbf16> to vector<16x16x4xbf16>
    %c0_6 = arith.constant 0 : index
    %c0_7 = arith.constant 0 : index
    %c0_8 = arith.constant 0 : index
    %c0_9 = arith.constant 0 : index
    %4 = vector.load %arg2[%c0_6, %c0_7, %c0_8, %c0_9] : memref<1x16x16x4xbf16, #tpu.memory_space<vmem>>, vector<1x16x16x4xbf16>
    %5 = vector.shape_cast %4 : vector<1x16x16x4xbf16> to vector<16x16x4xbf16>
    %6 = tpu.concatenate %3, %5 in 2 : vector<16x16x4xbf16>, vector<16x16x4xbf16> -> vector<16x16x8xbf16>
    %c1 = arith.constant 1 : index
    %c1_10 = arith.constant 1 : index
    %c0_11 = arith.constant 0 : index
    %7 = vector.load %arg6[%c1, %c1_10, %c0_11] : memref<18x18x8xbf16, #tpu.memory_space<vmem>>, vector<16x16x8xbf16>
    tpu.vector_store %arg6[%c1, %c1_10, %c0_11], %6 {strides = array<i32>} : memref<18x18x8xbf16, #tpu.memory_space<vmem>>, vector<16x16x8xbf16>,
    %c0_12 = arith.constant 0 : index
    %c0_13 = arith.constant 0 : index
    %c0_14 = arith.constant 0 : index
    %8 = vector.load %arg6[%c0_12, %c0_13, %c0_14] : memref<18x18x8xbf16, #tpu.memory_space<vmem>>, vector<18x18x8xbf16>
    %9 = vector.extract_strided_slice %8 {offsets = [0, 0, 0], sizes = [16, 16, 8], strides = [1, 1, 1]} : vector<18x18x8xbf16> to vector<16x16x8xbf16>
    %10 = vector.extract_strided_slice %8 {offsets = [0, 1, 0], sizes = [16, 16, 8], strides = [1, 1, 1]} : vector<18x18x8xbf16> to vector<16x16x8xbf16>
    %11 = vector.extract_strided_slice %8 {offsets = [0, 2, 0], sizes = [16, 16, 8], strides = [1, 1, 1]} : vector<18x18x8xbf16> to vector<16x16x8xbf16>
    %12 = vector.extract_strided_slice %8 {offsets = [1, 0, 0], sizes = [16, 16, 8], strides = [1, 1, 1]} : vector<18x18x8xbf16> to vector<16x16x8xbf16>
    %13 = vector.extract_strided_slice %8 {offsets = [1, 1, 0], sizes = [16, 16, 8], strides = [1, 1, 1]} : vector<18x18x8xbf16> to vector<16x16x8xbf16>
    %14 = vector.extract_strided_slice %8 {offsets = [1, 2, 0], sizes = [16, 16, 8], strides = [1, 1, 1]} : vector<18x18x8xbf16> to vector<16x16x8xbf16>
    %15 = vector.extract_strided_slice %8 {offsets = [2, 0, 0], sizes = [16, 16, 8], strides = [1, 1, 1]} : vector<18x18x8xbf16> to vector<16x16x8xbf16>
    %16 = vector.extract_strided_slice %8 {offsets = [2, 1, 0], sizes = [16, 16, 8], strides = [1, 1, 1]} : vector<18x18x8xbf16> to vector<16x16x8xbf16>
    %17 = vector.extract_strided_slice %8 {offsets = [2, 2, 0], sizes = [16, 16, 8], strides = [1, 1, 1]} : vector<18x18x8xbf16> to vector<16x16x8xbf16>
    %18 = tpu.concatenate %9, %10, %11, %12, %13, %14, %15, %16, %17 in 2 : vector<16x16x8xbf16>, vector<16x16x8xbf16>, vector<16x16x8xbf16>, vector<16x16x8xbf16>, vector<16x16x8xbf16>, vector<16x16x8xbf16>, vector<16x16x8xbf16>, vector<16x16x8xbf16>, vector<16x16x8xbf16> -> vector<16x16x72xbf16>
    %19 = vector.shape_cast %18 : vector<16x16x72xbf16> to vector<256x72xbf16>
    %c0_15 = arith.constant 0 : index
    %c0_16 = arith.constant 0 : index
    %20 = vector.load %arg3[%c0_15, %c0_16] : memref<72x4xbf16, #tpu.memory_space<vmem>>, vector<72x4xbf16>
    %cst_17 = arith.constant dense<0.000000e+00> : vector<256x4xf32>
    %21 = tpu.matmul %19, %20, %cst_17 {dimension_numbers = #tpu.dot_dimension_numbers<[1], [0], [0], [1], [0, 0, 1, 1], [], []>} : vector<256x72xbf16>, vector<72x4xbf16>, vector<256x4xf32> -> vector<256x4xf32>
    %22 = vector.shape_cast %21 : vector<256x4xf32> to vector<16x16x4xf32>
    %23 = arith.truncf %22 : vector<16x16x4xf32> to vector<16x16x4xbf16>
    %c0_18 = arith.constant 0 : index
    %c0_19 = arith.constant 0 : index
    %c0_20 = arith.constant 0 : index
    %c0_21 = arith.constant 0 : index
    %24 = vector.load %arg4[%c0_18, %c0_19, %c0_20, %c0_21] : memref<1x16x16x4xbf16, #tpu.memory_space<vmem>>, vector<1x16x16x4xbf16>
    %25 = vector.shape_cast %24 : vector<1x16x16x4xbf16> to vector<16x16x4xbf16>
    %26 = vector.shape_cast %23 : vector<16x16x4xbf16> to vector<1x16x16x4xbf16>
    tpu.vector_store %arg4[%c0_18, %c0_19, %c0_20, %c0_21], %26 {strides = array<i32>} : memref<1x16x16x4xbf16, #tpu.memory_space<vmem>>, vector<1x16x16x4xbf16>,
    %cst_22 = arith.constant dense<0.000000e+00> : vector<4xf32>
    %27 = vector.multi_reduction <add>, %21, %cst_22 [0] : vector<256x4xf32> to vector<4xf32>
    %28 = vector.shape_cast %27 : vector<4xf32> to vector<1x4xf32>
    %29 = arith.mulf %21, %21 : vector<256x4xf32>
    %cst_23 = arith.constant dense<0.000000e+00> : vector<4xf32>
    %30 = vector.multi_reduction <add>, %29, %cst_23 [0] : vector<256x4xf32> to vector<4xf32>
    %31 = vector.shape_cast %30 : vector<4xf32> to vector<1x4xf32>
    %32 = tpu.concatenate %28, %31 in 0 : vector<1x4xf32>, vector<1x4xf32> -> vector<2x4xf32>
    %c0_24 = arith.constant 0 : index
    %c0_25 = arith.constant 0 : index
    %c0_26 = arith.constant 0 : index
    %33 = vector.load %arg5[%c0_24, %c0_25, %c0_26] : memref<1x2x4xf32, #tpu.memory_space<vmem>>, vector<1x2x4xf32>
    %34 = vector.shape_cast %33 : vector<1x2x4xf32> to vector<2x4xf32>
    %35 = vector.shape_cast %32 : vector<2x4xf32> to vector<1x2x4xf32>
    tpu.vector_store %arg5[%c0_24, %c0_25, %c0_26], %35 {strides = array<i32>} : memref<1x2x4xf32, #tpu.memory_space<vmem>>, vector<1x2x4xf32>,
    return
  }
  func.func @transform_0(%arg0: i32) -> (i32, i32, i32, i32) {
    %c0_i32 = arith.constant 0 : i32
    %c0_i32_0 = arith.constant 0 : i32
    %c0_i32_1 = arith.constant 0 : i32
    %c0_i32_2 = arith.constant 0 : i32
    return %arg0, %c0_i32, %c0_i32_0, %c0_i32_1 : i32, i32, i32, i32
  }
  func.func @transform_1(%arg0: i32) -> (i32, i32, i32, i32) {
    %c0_i32 = arith.constant 0 : i32
    %c0_i32_0 = arith.constant 0 : i32
    %c0_i32_1 = arith.constant 0 : i32
    %c0_i32_2 = arith.constant 0 : i32
    return %arg0, %c0_i32, %c0_i32_0, %c0_i32_1 : i32, i32, i32, i32
  }
  func.func @transform_2(%arg0: i32) -> (i32, i32) {
    %c0_i32 = arith.constant 0 : i32
    %c0_i32_0 = arith.constant 0 : i32
    %c0_i32_1 = arith.constant 0 : i32
    return %c0_i32, %c0_i32_0 : i32, i32
  }
  func.func @transform_3(%arg0: i32) -> (i32, i32, i32, i32) {
    %c0_i32 = arith.constant 0 : i32
    %c0_i32_0 = arith.constant 0 : i32
    %c0_i32_1 = arith.constant 0 : i32
    %c0_i32_2 = arith.constant 0 : i32
    return %arg0, %c0_i32, %c0_i32_0, %c0_i32_1 : i32, i32, i32, i32
  }
  func.func @transform_4(%arg0: i32) -> (i32, i32, i32) {
    %c0_i32 = arith.constant 0 : i32
    %c0_i32_0 = arith.constant 0 : i32
    %c0_i32_1 = arith.constant 0 : i32
    return %arg0, %c0_i32, %c0_i32_0 : i32, i32, i32
  }
}

</mosaic_0001>

<llo_original>
// kernel: tpu_custom_call.1
$region0: #{tpu_custom_call.1}
  #allocation0 [shape = 'u32[]', space=smem, size = 0x4, offset = 0x4, fixed_abs, tag = 'smem constant byte address 0x4 - core index']
  #allocation1 [shape = 'u32[144,128]{1,0:T(1,128)}', space=vmem, size = 0x12000, scoped, tag = 'internal scratch']
  #allocation2 [shape = 'bf16[18,18,8]{2,1,0:T(8,128)(2,1)}', space=vmem, size = 0x1b000, scoped, tag = 'scratch operand']
  %s0 = inlined_call_operand.vmem [shape: bf16[2,16,16,4], index: 0, kind: input, shape index: {}]
  %s1 = inlined_call_operand.vmem [shape: bf16[2,16,16,4], index: 1, kind: input, shape index: {}]
  %s2 = inlined_call_operand.vmem [shape: bf16[72,4], index: 2, kind: input, shape index: {}]
  %s3 = inlined_call_operand.vmem [shape: bf16[2,16,16,4], index: 3, kind: output, shape index: {0}]
  %s4 = inlined_call_operand.hbm [shape: f32[2,2,4], index: 4, kind: output, shape index: {1}]
  %5 = xla_tuple %s3, %s4
  %s6 = sld [smem:[#allocation0]]
  $region53: #{tpu_custom_call.1} parent=0
    _
  %s8 = ssub.s32 1, %s6
  %s9 = scalar_select 0, %s8, %s6
  $region1: #{tpu_custom_call.1} parent=0
    #allocation3 [shape = 'u8[2048]{0}', space=vmem, size = 0x800, scoped, tag = 'output window, operand 1']
    #allocation4 [shape = 's32[2]{0}', space=sflag, size = 0x8, scoped, tag = 'scoped memory for tpu_custom_call.1']
    %10 = vsyncpa [#allocation4], 0
    %s11 = scalar_lea.sflag [#allocation4], 1
    %12 = vsyncpa %s11, 0
    loop: start=0, step=1, limit=4
    $region2: #{tpu_custom_call.1} parent=1 // loop_pre_header
      _
    $region3: #{tpu_custom_call.1} parent=1 // loop_header
      %s14 = sphi 0, %s18
      %p15 = scmp.ge.s32.totalorder %s14, 4
      %s24 = sphi 0, %s26
      %s27 = sphi 0, %s24
      %s28 = sphi 0, %s27
      %s44 = sphi 0, %s28
      %s50 = sphi 0, %s52
      %s53 = sphi 0, %s50
      %s54 = sphi 0, %s53
      %s70 = sphi 0, %s54
      %s74 = sphi 0, %s74
      %s76 = sphi 0, %s74
      %s77 = sphi 0, %s76
      %s91 = sphi 0, %s77
      %s97 = sphi 0, %s99
      %s100 = sphi 0, %s97
      %s101 = sphi 0, %s100
      %s117 = sphi 0, %s101
      %s123 = sphi 0, %s125
      %s126 = sphi 0, %s123
      %s127 = sphi 0, %s126
      %s143 = sphi 0, %s127
    $region4: #{tpu_custom_call.1} parent=1 // loop_header_branch
      %17 = sbr.rel (%p15) target = $region8
    $region5: #{tpu_custom_call.1} parent=1 // loop_body
      %s19 = ssub.s32 %s14, 1
      %s20 = ssub.s32 %s14, 2
      %s21 = sadd.s32 %s14, 1
      %s22 = ssub.s32 %s14, %s21
      %p23 = scmp.eq.s32.totalorder %s22, 0
      %s25 = sadd.s32 %s24, 1
      %s26 = scalar_select %p23, %s24, %s25
      %p29 = pneg %p23
      %p30 = scmp.eq.s32.totalorder %s14, 1
      %p31 = por %p29, %p30
      %p32 = scmp.ne.s32.totalorder %s24, %s27
      %p33 = scmp.eq.s32.totalorder %s14, 0
      %p34 = por %p32, %p33
      %p35 = scmp.ne.s32.totalorder %s24, %s27
      %p36 = scmp.eq.s32.totalorder %s19, 1
      %p37 = por %p35, %p36
      %p38 = scmp.ne.s32.totalorder %s27, %s28
      %p39 = scmp.eq.s32.totalorder %s19, 0
      %p40 = por %p38, %p39
      %p41 = scmp.ne.s32.totalorder %s27, %s28
      %p42 = scmp.eq.s32.totalorder %s20, 1
      %p43 = por %p41, %p42
      %p45 = scmp.ne.s32.totalorder %s28, %s44
      %p46 = scmp.eq.s32.totalorder %s20, 0
      %p47 = por %p45, %p46
      %s48 = ssub.s32 %s14, %s21
      %p49 = scmp.eq.s32.totalorder %s48, 0
      %s51 = sadd.s32 %s50, 1
      %s52 = scalar_select %p49, %s50, %s51
      %p55 = pneg %p49
      %p56 = scmp.eq.s32.totalorder %s14, 1
      %p57 = por %p55, %p56
      %p58 = scmp.ne.s32.totalorder %s50, %s53
      %p59 = scmp.eq.s32.totalorder %s14, 0
      %p60 = por %p58, %p59
      %p61 = scmp.ne.s32.totalorder %s50, %s53
      %p62 = scmp.eq.s32.totalorder %s19, 1
      %p63 = por %p61, %p62
      %p64 = scmp.ne.s32.totalorder %s53, %s54
      %p65 = scmp.eq.s32.totalorder %s19, 0
      %p66 = por %p64, %p65
      %p67 = scmp.ne.s32.totalorder %s53, %s54
      %p68 = scmp.eq.s32.totalorder %s20, 1
      %p69 = por %p67, %p68
      %p71 = scmp.ne.s32.totalorder %s54, %s70
      %p72 = scmp.eq.s32.totalorder %s20, 0
      %p73 = por %p71, %p72
      %s75 = sadd.s32 %s74, 1
      %p78 = scmp.eq.s32.totalorder %s14, 1
      %p79 = scmp.ne.s32.totalorder %s74, %s76
      %p80 = scmp.eq.s32.totalorder %s14, 0
      %p81 = por %p79, %p80
      %p82 = scmp.ne.s32.totalorder %s74, %s76
      %p83 = scmp.eq.s32.totalorder %s19, 1
      %p84 = por %p82, %p83
      %p85 = scmp.ne.s32.totalorder %s76, %s77
      %p86 = scmp.eq.s32.totalorder %s19, 0
      %p87 = por %p85, %p86
      %p88 = scmp.ne.s32.totalorder %s76, %s77
      %p89 = scmp.eq.s32.totalorder %s20, 1
      %p90 = por %p88, %p89
      %p92 = scmp.ne.s32.totalorder %s77, %s91
      %p93 = scmp.eq.s32.totalorder %s20, 0
      %p94 = por %p92, %p93
      %s95 = ssub.s32 %s14, %s21
      %p96 = scmp.eq.s32.totalorder %s95, 0
      %s98 = sadd.s32 %s97, 1
      %s99 = scalar_select %p96, %s97, %s98
      %p102 = pneg %p96
      %p103 = scmp.eq.s32.totalorder %s14, 1
      %p104 = por %p102, %p103
      %p105 = scmp.ne.s32.totalorder %s97, %s100
      %p106 = scmp.eq.s32.totalorder %s14, 0
      %p107 = por %p105, %p106
      %p108 = scmp.ne.s32.totalorder %s97, %s100
      %p109 = scmp.eq.s32.totalorder %s19, 1
      %p110 = por %p108, %p109
      %p111 = scmp.ne.s32.totalorder %s100, %s101
      %p112 = scmp.eq.s32.totalorder %s19, 0
      %p113 = por %p111, %p112
      %p114 = scmp.ne.s32.totalorder %s100, %s101
      %p115 = scmp.eq.s32.totalorder %s20, 1
      %p116 = por %p114, %p115
      %p118 = scmp.ne.s32.totalorder %s101, %s117
      %p119 = scmp.eq.s32.totalorder %s20, 0
      %p120 = por %p118, %p119
      %s121 = ssub.s32 %s14, %s21
      %p122 = scmp.eq.s32.totalorder %s121, 0
      %s124 = sadd.s32 %s123, 1
      %s125 = scalar_select %p122, %s123, %s124
      %p128 = pneg %p122
      %p129 = scmp.eq.s32.totalorder %s14, 1
      %p130 = por %p128, %p129
      %p131 = scmp.ne.s32.totalorder %s123, %s126
      %p132 = scmp.eq.s32.totalorder %s14, 0
      %p133 = por %p131, %p132
      %p134 = scmp.ne.s32.totalorder %s123, %s126
      %p135 = scmp.eq.s32.totalorder %s19, 1
      %p136 = por %p134, %p135
      %p137 = scmp.ne.s32.totalorder %s126, %s127
      %p138 = scmp.eq.s32.totalorder %s19, 0
      %p139 = por %p137, %p138
      %p140 = scmp.ne.s32.totalorder %s126, %s127
      %p141 = scmp.eq.s32.totalorder %s20, 1
      %p142 = por %p140, %p141
      %p144 = scmp.ne.s32.totalorder %s127, %s143
      %p145 = scmp.eq.s32.totalorder %s20, 0
      %p146 = por %p144, %p145
      %p147 = scmp.le.s32.totalorder 1, %s14
      %p148 = scmp.lt.s32.totalorder %s14, 3
      %p149 = pnand %p147, %p148
      %p150 = pneg %p149
      // Predicated region
      $region9: #{tpu_custom_call.1} parent=5 // pred_check
        _
      $region10: #{tpu_custom_call.1} parent=5 // pred_check_branch
        %152 = sbr.rel (%p149) target = $region12
      $region11: #{tpu_custom_call.1} parent=5 // pred_region
        %s153 = ssub.s32 %s14, 1
        // Predicated region
        $region13: #{tpu_custom_call.1} parent=11 // pred_check
          %p154 = pneg %p87
        $region14: #{tpu_custom_call.1} parent=11 // pred_check_branch
          %156 = sbr.rel (%p154) target = $region16
        $region15: #{tpu_custom_call.1} parent=11 // pred_region
          _
        $region16: #{tpu_custom_call.1} parent=11 // pred_fallthru
          _
      $region12: #{tpu_custom_call.1} parent=5 // pred_fallthru
        _
      %p157 = scmp.lt.s32.totalorder %s14, 2
      // Predicated region
      $region17: #{tpu_custom_call.1} parent=5 // pred_check
        %p158 = pneg %p157
      $region18: #{tpu_custom_call.1} parent=5 // pred_check_branch
        %160 = sbr.rel (%p158) target = $region20
      $region19: #{tpu_custom_call.1} parent=5 // pred_region
        // Predicated region
        $region21: #{tpu_custom_call.1} parent=19 // pred_check
          %p161 = pneg %p34
        $region22: #{tpu_custom_call.1} parent=19 // pred_check_branch
          %163 = sbr.rel (%p161) target = $region24
        $region23: #{tpu_custom_call.1} parent=19 // pred_region
          %p164 = scmp.lt.s32.totalorder %s14, 1
          %s165 = scalar_select %p164, %s14, 1
          %s166 = smul.addr %s165, 32
          %s167 = smul.addr %s166, 4
          %s168 = scalar_lea.vmem %s0, %s167
        $region24: #{tpu_custom_call.1} parent=19 // pred_fallthru
          _
        // Predicated region
        $region25: #{tpu_custom_call.1} parent=19 // pred_check
          %p169 = pneg %p60
        $region26: #{tpu_custom_call.1} parent=19 // pred_check_branch
          %171 = sbr.rel (%p169) target = $region28
        $region27: #{tpu_custom_call.1} parent=19 // pred_region
          %p172 = scmp.lt.s32.totalorder %s14, 1
          %s173 = scalar_select %p172, %s14, 1
          %s174 = smul.addr %s173, 32
          %s175 = smul.addr %s174, 4
          %s176 = scalar_lea.vmem %s1, %s175
        $region28: #{tpu_custom_call.1} parent=19 // pred_fallthru
          _
      $region20: #{tpu_custom_call.1} parent=5 // pred_fallthru
        _
      %p177 = scmp.le.s32.totalorder 1, %s14
      %p178 = scmp.lt.s32.totalorder %s14, 3
      %p179 = pnand %p177, %p178
      %p180 = pneg %p179
      // Predicated region
      $region29: #{tpu_custom_call.1} parent=5 // pred_check
        _
      $region30: #{tpu_custom_call.1} parent=5 // pred_check_branch
        %182 = sbr.rel (%p179) target = $region32
      $region31: #{tpu_custom_call.1} parent=5 // pred_region
        %s183 = ssub.s32 %s14, 1
        %p184 = scmp.lt.s32.totalorder %s19, 1
        %s185 = scalar_select %p184, %s19, 1
        %s186 = smul.addr %s185, 32
        %s187 = smul.addr %s186, 4
        %s188 = scalar_lea.vmem %s0, %s187
        %p189 = pneg %p40
        %p190 = pneg %p37
        %p191 = scmp.lt.s32.totalorder %s19, 1
        %s192 = scalar_select %p191, %s19, 1
        %s193 = smul.addr %s192, 32
        %s194 = smul.addr %s193, 4
        %s195 = scalar_lea.vmem %s1, %s194
        %p196 = pneg %p66
        %p197 = pneg %p63
        %p198 = pneg %p87
        %p199 = pneg %p84
        %p200 = pneg %p113
        %p201 = pneg %p110
        %p202 = scmp.lt.s32.totalorder %s19, 1
        %s203 = scalar_select %p202, %s19, 1
        %s204 = smul.addr %s203, 32
        %s205 = smul.addr %s204, 4
        %s206 = scalar_lea.vmem %s3, %s205
        %p207 = pneg %p139
        %p208 = pneg %p136
        %s209 = sand.u32 %s126, 1
        %s210 = scalar_lea.sflag [#allocation4], %s209
        %s211 = sand.u32 %s126, 1
        %s212 = smul.addr %s211, 2
        %s213 = scalar_lea.vmem [#allocation3], %s212
        %p214 = scmp.lt.s32.totalorder %s19, 1
        %s215 = scalar_select %p214, %s19, 1
        %s216 = smul.addr %s215, 32
        %s217 = smul.addr %s216, 4
        %s218 = scalar_lea.vmem %s0, %s217
        %p219 = scmp.lt.s32.totalorder %s19, 1
        %s220 = scalar_select %p219, %s19, 1
        %s221 = smul.addr %s220, 32
        %s222 = smul.addr %s221, 4
        %s223 = scalar_lea.vmem %s1, %s222
        %p224 = scmp.lt.s32.totalorder %s19, 1
        %s225 = scalar_select %p224, %s19, 1
        %s226 = smul.addr %s225, 32
        %s227 = smul.addr %s226, 4
        %s228 = scalar_lea.vmem %s3, %s227
        %vm230 = vcmask 60416
        %231 = vst.msk [vmem:[#allocation2] sm:$0xf] %vm230, 0
        %232 = vst.msk [vmem:[#allocation2 + $0x4] sm:$0xf] %vm230, 0
        %vm233 = vcmask 57344
        %234 = vst.msk [vmem:[#allocation2 + $0x8] sm:$0x1] %vm233, 0
        %235 = vst.msk [vmem:[#allocation2 + $0xc] sm:$0xf] %vm230, 0
        %236 = vst.msk [vmem:[#allocation2 + $0x10] sm:$0xf] %vm230, 0
        %237 = vst.msk [vmem:[#allocation2 + $0x14] sm:$0x1] %vm233, 0
        %238 = vst.msk [vmem:[#allocation2 + $0x18] sm:$0xf] %vm230, 0
        %239 = vst.msk [vmem:[#allocation2 + $0x1c] sm:$0xf] %vm230, 0
        %240 = vst.msk [vmem:[#allocation2 + $0x20] sm:$0x1] %vm233, 0
        %241 = vst.msk [vmem:[#allocation2 + $0x24] sm:$0xf] %vm230, 0
        %242 = vst.msk [vmem:[#allocation2 + $0x28] sm:$0xf] %vm230, 0
        %243 = vst.msk [vmem:[#allocation2 + $0x2c] sm:$0x1] %vm233, 0
        %244 = vst.msk [vmem:[#allocation2 + $0x30] sm:$0xf] %vm230, 0
        %245 = vst.msk [vmem:[#allocation2 + $0x34] sm:$0xf] %vm230, 0
        %246 = vst.msk [vmem:[#allocation2 + $0x38] sm:$0x1] %vm233, 0
        %247 = vst.msk [vmem:[#allocation2 + $0x3c] sm:$0xf] %vm230, 0
        %248 = vst.msk [vmem:[#allocation2 + $0x40] sm:$0xf] %vm230, 0
        %249 = vst.msk [vmem:[#allocation2 + $0x44] sm:$0x1] %vm233, 0
        %250 = vst.msk [vmem:[#allocation2 + $0x48] sm:$0xf] %vm230, 0
        %251 = vst.msk [vmem:[#allocation2 + $0x4c] sm:$0xf] %vm230, 0
        %252 = vst.msk [vmem:[#allocation2 + $0x50] sm:$0x1] %vm233, 0
        %253 = vst.msk [vmem:[#allocation2 + $0x54] sm:$0xf] %vm230, 0
        %254 = vst.msk [vmem:[#allocation2 + $0x58] sm:$0xf] %vm230, 0
        %255 = vst.msk [vmem:[#allocation2 + $0x5c] sm:$0x1] %vm233, 0
        %256 = vst.msk [vmem:[#allocation2 + $0x60] sm:$0xf] %vm230, 0
        %257 = vst.msk [vmem:[#allocation2 + $0x64] sm:$0xf] %vm230, 0
        %258 = vst.msk [vmem:[#allocation2 + $0x68] sm:$0x1] %vm233, 0
        %259 = vst.msk [vmem:[#allocation2 + $0x6c] sm:$0xf] %vm230, 0
        %260 = vst.msk [vmem:[#allocation2 + $0x70] sm:$0xf] %vm230, 0
        %261 = vst.msk [vmem:[#allocation2 + $0x74] sm:$0x1] %vm233, 0
        %262 = vst.msk [vmem:[#allocation2 + $0x78] sm:$0xf] %vm230, 0
        %263 = vst.msk [vmem:[#allocation2 + $0x7c] sm:$0xf] %vm230, 0
        %264 = vst.msk [vmem:[#allocation2 + $0x80] sm:$0x1] %vm233, 0
        %265 = vst.msk [vmem:[#allocation2 + $0x84] sm:$0xf] %vm230, 0
        %266 = vst.msk [vmem:[#allocation2 + $0x88] sm:$0xf] %vm230, 0
        %267 = vst.msk [vmem:[#allocation2 + $0x8c] sm:$0x1] %vm233, 0
        %268 = vst.msk [vmem:[#allocation2 + $0x90] sm:$0xf] %vm230, 0
        %269 = vst.msk [vmem:[#allocation2 + $0x94] sm:$0xf] %vm230, 0
        %270 = vst.msk [vmem:[#allocation2 + $0x98] sm:$0x1] %vm233, 0
        %271 = vst.msk [vmem:[#allocation2 + $0x9c] sm:$0xf] %vm230, 0
        %272 = vst.msk [vmem:[#allocation2 + $0xa0] sm:$0xf] %vm230, 0
        %273 = vst.msk [vmem:[#allocation2 + $0xa4] sm:$0x1] %vm233, 0
        %274 = vst.msk [vmem:[#allocation2 + $0xa8] sm:$0xf] %vm230, 0
        %275 = vst.msk [vmem:[#allocation2 + $0xac] sm:$0xf] %vm230, 0
        %276 = vst.msk [vmem:[#allocation2 + $0xb0] sm:$0x1] %vm233, 0
        %277 = vst.msk [vmem:[#allocation2 + $0xb4] sm:$0xf] %vm230, 0
        %278 = vst.msk [vmem:[#allocation2 + $0xb8] sm:$0xf] %vm230, 0
        %279 = vst.msk [vmem:[#allocation2 + $0xbc] sm:$0x1] %vm233, 0
        %280 = vst.msk [vmem:[#allocation2 + $0xc0] sm:$0xf] %vm230, 0
        %281 = vst.msk [vmem:[#allocation2 + $0xc4] sm:$0xf] %vm230, 0
        %282 = vst.msk [vmem:[#allocation2 + $0xc8] sm:$0x1] %vm233, 0
        %283 = vst.msk [vmem:[#allocation2 + $0xcc] sm:$0xf] %vm230, 0
        %284 = vst.msk [vmem:[#allocation2 + $0xd0] sm:$0xf] %vm230, 0
        %285 = vst.msk [vmem:[#allocation2 + $0xd4] sm:$0x1] %vm233, 0
        %v286 = vld [vmem:[%s218] sm:$0xf]
        %v287 = vld [vmem:[%s218 + $0x4] sm:$0xf]
        %v288 = vld [vmem:[%s218 + $0x8] sm:$0xf]
        %v289 = vld [vmem:[%s218 + $0xc] sm:$0xf]
        %v290 = vld [vmem:[%s218 + $0x10] sm:$0xf]
        %v291 = vld [vmem:[%s218 + $0x14] sm:$0xf]
        %v292 = vld [vmem:[%s218 + $0x18] sm:$0xf]
        %v293 = vld [vmem:[%s218 + $0x1c] sm:$0xf]
        %v294 = vld [vmem:[%s218 + $0x20] sm:$0xf]
        %v295 = vld [vmem:[%s218 + $0x24] sm:$0xf]
        %v296 = vld [vmem:[%s218 + $0x28] sm:$0xf]
        %v297 = vld [vmem:[%s218 + $0x2c] sm:$0xf]
        %v298 = vld [vmem:[%s218 + $0x30] sm:$0xf]
        %v299 = vld [vmem:[%s218 + $0x34] sm:$0xf]
        %v300 = vld [vmem:[%s218 + $0x38] sm:$0xf]
        %v301 = vld [vmem:[%s218 + $0x3c] sm:$0xf]
        %v302 = vld [vmem:[%s218 + $0x40] sm:$0xf]
        %v303 = vld [vmem:[%s218 + $0x44] sm:$0xf]
        %v304 = vld [vmem:[%s218 + $0x48] sm:$0xf]
        %v305 = vld [vmem:[%s218 + $0x4c] sm:$0xf]
        %v306 = vld [vmem:[%s218 + $0x50] sm:$0xf]
        %v307 = vld [vmem:[%s218 + $0x54] sm:$0xf]
        %v308 = vld [vmem:[%s218 + $0x58] sm:$0xf]
        %v309 = vld [vmem:[%s218 + $0x5c] sm:$0xf]
        %v310 = vld [vmem:[%s218 + $0x60] sm:$0xf]
        %v311 = vld [vmem:[%s218 + $0x64] sm:$0xf]
        %v312 = vld [vmem:[%s218 + $0x68] sm:$0xf]
        %v313 = vld [vmem:[%s218 + $0x6c] sm:$0xf]
        %v314 = vld [vmem:[%s218 + $0x70] sm:$0xf]
        %v315 = vld [vmem:[%s218 + $0x74] sm:$0xf]
        %v316 = vld [vmem:[%s218 + $0x78] sm:$0xf]
        %v317 = vld [vmem:[%s218 + $0x7c] sm:$0xf]
        %v318 = vld [vmem:[%s223] sm:$0xf]
        %v319 = vld [vmem:[%s223 + $0x4] sm:$0xf]
        %v320 = vld [vmem:[%s223 + $0x8] sm:$0xf]
        %v321 = vld [vmem:[%s223 + $0xc] sm:$0xf]
        %v322 = vld [vmem:[%s223 + $0x10] sm:$0xf]
        %v323 = vld [vmem:[%s223 + $0x14] sm:$0xf]
        %v324 = vld [vmem:[%s223 + $0x18] sm:$0xf]
        %v325 = vld [vmem:[%s223 + $0x1c] sm:$0xf]
        %v326 = vld [vmem:[%s223 + $0x20] sm:$0xf]
        %v327 = vld [vmem:[%s223 + $0x24] sm:$0xf]
        %v328 = vld [vmem:[%s223 + $0x28] sm:$0xf]
        %v329 = vld [vmem:[%s223 + $0x2c] sm:$0xf]
        %v330 = vld [vmem:[%s223 + $0x30] sm:$0xf]
        %v331 = vld [vmem:[%s223 + $0x34] sm:$0xf]
        %v332 = vld [vmem:[%s223 + $0x38] sm:$0xf]
        %v333 = vld [vmem:[%s223 + $0x3c] sm:$0xf]
        %v334 = vld [vmem:[%s223 + $0x40] sm:$0xf]
        %v335 = vld [vmem:[%s223 + $0x44] sm:$0xf]
        %v336 = vld [vmem:[%s223 + $0x48] sm:$0xf]
        %v337 = vld [vmem:[%s223 + $0x4c] sm:$0xf]
        %v338 = vld [vmem:[%s223 + $0x50] sm:$0xf]
        %v339 = vld [vmem:[%s223 + $0x54] sm:$0xf]
        %v340 = vld [vmem:[%s223 + $0x58] sm:$0xf]
        %v341 = vld [vmem:[%s223 + $0x5c] sm:$0xf]
        %v342 = vld [vmem:[%s223 + $0x60] sm:$0xf]
        %v343 = vld [vmem:[%s223 + $0x64] sm:$0xf]
        %v344 = vld [vmem:[%s223 + $0x68] sm:$0xf]
        %v345 = vld [vmem:[%s223 + $0x6c] sm:$0xf]
        %v346 = vld [vmem:[%s223 + $0x70] sm:$0xf]
        %v347 = vld [vmem:[%s223 + $0x74] sm:$0xf]
        %v348 = vld [vmem:[%s223 + $0x78] sm:$0xf]
        %v349 = vld [vmem:[%s223 + $0x7c] sm:$0xf]
        %v382 = vunpack.c.l.b16 %v286
        %v383 = vunpack.c.l.b16 %v287
        %v384 = vunpack.c.l.b16 %v288
        %v385 = vunpack.c.l.b16 %v289
        %v386 = vunpack.c.l.b16 %v290
        %v387 = vunpack.c.l.b16 %v291
        %v388 = vunpack.c.l.b16 %v292
        %v389 = vunpack.c.l.b16 %v293
        %v390 = vunpack.c.l.b16 %v294
        %v391 = vunpack.c.l.b16 %v295
        %v392 = vunpack.c.l.b16 %v296
        %v393 = vunpack.c.l.b16 %v297
        %v394 = vunpack.c.l.b16 %v298
        %v395 = vunpack.c.l.b16 %v299
        %v396 = vunpack.c.l.b16 %v300
        %v397 = vunpack.c.l.b16 %v301
        %v398 = vunpack.c.l.b16 %v302
        %v399 = vunpack.c.l.b16 %v303
        %v400 = vunpack.c.l.b16 %v304
        %v401 = vunpack.c.l.b16 %v305
        %v402 = vunpack.c.l.b16 %v306
        %v403 = vunpack.c.l.b16 %v307
        %v404 = vunpack.c.l.b16 %v308
        %v405 = vunpack.c.l.b16 %v309
        %v406 = vunpack.c.l.b16 %v310
        %v407 = vunpack.c.l.b16 %v311
        %v408 = vunpack.c.l.b16 %v312
        %v409 = vunpack.c.l.b16 %v313
        %v410 = vunpack.c.l.b16 %v314
        %v411 = vunpack.c.l.b16 %v315
        %v412 = vunpack.c.l.b16 %v316
        %v413 = vunpack.c.l.b16 %v317
        %v414 = vpack.c.b16 %v383, %v382
        %v415 = vpack.c.b16 %v385, %v384
        %v416 = vpack.c.b16 %v387, %v386
        %v417 = vpack.c.b16 %v389, %v388
        %v418 = vpack.c.b16 %v391, %v390
        %v419 = vpack.c.b16 %v393, %v392
        %v420 = vpack.c.b16 %v395, %v394
        %v421 = vpack.c.b16 %v397, %v396
        %v422 = vpack.c.b16 %v399, %v398
        %v423 = vpack.c.b16 %v401, %v400
        %v424 = vpack.c.b16 %v403, %v402
        %v425 = vpack.c.b16 %v405, %v404
        %v426 = vpack.c.b16 %v407, %v406
        %v427 = vpack.c.b16 %v409, %v408
        %v428 = vpack.c.b16 %v411, %v410
        %v429 = vpack.c.b16 %v413, %v412
        %v462 = vunpack.c.l.b16 %v318
        %v463 = vunpack.c.l.b16 %v319
        %v464 = vunpack.c.l.b16 %v320
        %v465 = vunpack.c.l.b16 %v321
        %v466 = vunpack.c.l.b16 %v322
        %v467 = vunpack.c.l.b16 %v323
        %v468 = vunpack.c.l.b16 %v324
        %v469 = vunpack.c.l.b16 %v325
        %v470 = vunpack.c.l.b16 %v326
        %v471 = vunpack.c.l.b16 %v327
        %v472 = vunpack.c.l.b16 %v328
        %v473 = vunpack.c.l.b16 %v329
        %v474 = vunpack.c.l.b16 %v330
        %v475 = vunpack.c.l.b16 %v331
        %v476 = vunpack.c.l.b16 %v332
        %v477 = vunpack.c.l.b16 %v333
        %v478 = vunpack.c.l.b16 %v334
        %v479 = vunpack.c.l.b16 %v335
        %v480 = vunpack.c.l.b16 %v336
        %v481 = vunpack.c.l.b16 %v337
        %v482 = vunpack.c.l.b16 %v338
        %v483 = vunpack.c.l.b16 %v339
        %v484 = vunpack.c.l.b16 %v340
        %v485 = vunpack.c.l.b16 %v341
        %v486 = vunpack.c.l.b16 %v342
        %v487 = vunpack.c.l.b16 %v343
        %v488 = vunpack.c.l.b16 %v344
        %v489 = vunpack.c.l.b16 %v345
        %v490 = vunpack.c.l.b16 %v346
        %v491 = vunpack.c.l.b16 %v347
        %v492 = vunpack.c.l.b16 %v348
        %v493 = vunpack.c.l.b16 %v349
        %v494 = vpack.c.b16 %v463, %v462
        %v495 = vpack.c.b16 %v465, %v464
        %v496 = vpack.c.b16 %v467, %v466
        %v497 = vpack.c.b16 %v469, %v468
        %v498 = vpack.c.b16 %v471, %v470
        %v499 = vpack.c.b16 %v473, %v472
        %v500 = vpack.c.b16 %v475, %v474
        %v501 = vpack.c.b16 %v477, %v476
        %v502 = vpack.c.b16 %v479, %v478
        %v503 = vpack.c.b16 %v481, %v480
        %v504 = vpack.c.b16 %v483, %v482
        %v505 = vpack.c.b16 %v485, %v484
        %v506 = vpack.c.b16 %v487, %v486
        %v507 = vpack.c.b16 %v489, %v488
        %v508 = vpack.c.b16 %v491, %v490
        %v509 = vpack.c.b16 %v493, %v492
        %510 = vrot.lane.b32.xlu0 %v494, 4
        %v511 = vpop.permute.xlu0 %510
        %512 = vrot.lane.b32.xlu0 %v495, 4
        %v513 = vpop.permute.xlu0 %512
        %514 = vrot.lane.b32.xlu0 %v496, 4
        %v515 = vpop.permute.xlu0 %514
        %516 = vrot.lane.b32.xlu0 %v497, 4
        %v517 = vpop.permute.xlu0 %516
        %518 = vrot.lane.b32.xlu0 %v498, 4
        %v519 = vpop.permute.xlu0 %518
        %520 = vrot.lane.b32.xlu0 %v499, 4
        %v521 = vpop.permute.xlu0 %520
        %522 = vrot.lane.b32.xlu0 %v500, 4
        %v523 = vpop.permute.xlu0 %522
        %524 = vrot.lane.b32.xlu0 %v501, 4
        %v525 = vpop.permute.xlu0 %524
        %526 = vrot.lane.b32.xlu0 %v502, 4
        %v527 = vpop.permute.xlu0 %526
        %528 = vrot.lane.b32.xlu0 %v503, 4
        %v529 = vpop.permute.xlu0 %528
        %530 = vrot.lane.b32.xlu0 %v504, 4
        %v531 = vpop.permute.xlu0 %530
        %532 = vrot.lane.b32.xlu0 %v505, 4
        %v533 = vpop.permute.xlu0 %532
        %534 = vrot.lane.b32.xlu0 %v506, 4
        %v535 = vpop.permute.xlu0 %534
        %536 = vrot.lane.b32.xlu0 %v507, 4
        %v537 = vpop.permute.xlu0 %536
        %538 = vrot.lane.b32.xlu0 %v508, 4
        %v539 = vpop.permute.xlu0 %538
        %540 = vrot.lane.b32.xlu0 %v509, 4
        %v541 = vpop.permute.xlu0 %540
        %vm542 = vcmask 31744
        %v545 = vsel %vm542, %v414, %v511
        %v548 = vsel %vm542, %v415, %v513
        %v551 = vsel %vm542, %v416, %v515
        %v554 = vsel %vm542, %v417, %v517
        %v557 = vsel %vm542, %v418, %v519
        %v560 = vsel %vm542, %v419, %v521
        %v563 = vsel %vm542, %v420, %v523
        %v566 = vsel %vm542, %v421, %v525
        %v569 = vsel %vm542, %v422, %v527
        %v572 = vsel %vm542, %v423, %v529
        %v575 = vsel %vm542, %v424, %v531
        %v578 = vsel %vm542, %v425, %v533
        %v581 = vsel %vm542, %v426, %v535
        %v584 = vsel %vm542, %v427, %v537
        %v587 = vsel %vm542, %v428, %v539
        %v590 = vsel %vm542, %v429, %v541
        %v607 = vunpack.c.l.b16 %v545
        %v608 = vunpack.c.h.b16 %v545
        %v609 = vunpack.c.l.b16 %v548
        %v610 = vunpack.c.h.b16 %v548
        %v611 = vunpack.c.l.b16 %v551
        %v612 = vunpack.c.h.b16 %v551
        %v613 = vunpack.c.l.b16 %v554
        %v614 = vunpack.c.h.b16 %v554
        %v615 = vunpack.c.l.b16 %v557
        %v616 = vunpack.c.h.b16 %v557
        %v617 = vunpack.c.l.b16 %v560
        %v618 = vunpack.c.h.b16 %v560
        %v619 = vunpack.c.l.b16 %v563
        %v620 = vunpack.c.h.b16 %v563
        %v621 = vunpack.c.l.b16 %v566
        %v622 = vunpack.c.h.b16 %v566
        %v623 = vunpack.c.l.b16 %v569
        %v624 = vunpack.c.h.b16 %v569
        %v625 = vunpack.c.l.b16 %v572
        %v626 = vunpack.c.h.b16 %v572
        %v627 = vunpack.c.l.b16 %v575
        %v628 = vunpack.c.h.b16 %v575
        %v629 = vunpack.c.l.b16 %v578
        %v630 = vunpack.c.h.b16 %v578
        %v631 = vunpack.c.l.b16 %v581
        %v632 = vunpack.c.h.b16 %v581
        %v633 = vunpack.c.l.b16 %v584
        %v634 = vunpack.c.h.b16 %v584
        %v635 = vunpack.c.l.b16 %v587
        %v636 = vunpack.c.h.b16 %v587
        %v637 = vunpack.c.l.b16 %v590
        %v638 = vunpack.c.h.b16 %v590
        %v639 = vpack.c.b16 %v607, %v607
        %v640 = vpack.c.b16 %v608, %v608
        %v641 = vpack.c.b16 %v609, %v609
        %v642 = vpack.c.b16 %v610, %v610
        %v643 = vpack.c.b16 %v611, %v611
        %v644 = vpack.c.b16 %v612, %v612
        %v645 = vpack.c.b16 %v613, %v613
        %v646 = vpack.c.b16 %v614, %v614
        %v647 = vpack.c.b16 %v615, %v615
        %v648 = vpack.c.b16 %v616, %v616
        %v649 = vpack.c.b16 %v617, %v617
        %v650 = vpack.c.b16 %v618, %v618
        %v651 = vpack.c.b16 %v619, %v619
        %v652 = vpack.c.b16 %v620, %v620
        %v653 = vpack.c.b16 %v621, %v621
        %v654 = vpack.c.b16 %v622, %v622
        %v655 = vpack.c.b16 %v623, %v623
        %v656 = vpack.c.b16 %v624, %v624
        %v657 = vpack.c.b16 %v625, %v625
        %v658 = vpack.c.b16 %v626, %v626
        %v659 = vpack.c.b16 %v627, %v627
        %v660 = vpack.c.b16 %v628, %v628
        %v661 = vpack.c.b16 %v629, %v629
        %v662 = vpack.c.b16 %v630, %v630
        %v663 = vpack.c.b16 %v631, %v631
        %v664 = vpack.c.b16 %v632, %v632
        %v665 = vpack.c.b16 %v633, %v633
        %v666 = vpack.c.b16 %v634, %v634
        %v667 = vpack.c.b16 %v635, %v635
        %v668 = vpack.c.b16 %v636, %v636
        %v669 = vpack.c.b16 %v637, %v637
        %v670 = vpack.c.b16 %v638, %v638
        %vm671 = vsmask.f32 256
        %vm672 = vsmask.f32 4368
        %vm673 = vmor %vm671, %vm672
        %v675 = vshrl.u32 %v639, 16
        %v677 = vrot.slane %v675, 7
        %v678 = vshll.u32 %v639, 16
        %v680 = vor.u32 %v677, %v678
        %v681 = vrot.slane %v677, 4
        %v683 = vshrl.u32 %v640, 16
        %v685 = vrot.slane %v683, 7
        %v686 = vshll.u32 %v640, 16
        %v688 = vor.u32 %v685, %v686
        %v689 = vsel %vm673, %v681, %v688
        %v690 = vrot.slane %v685, 4
        %v692 = vshrl.u32 %v641, 16
        %v694 = vrot.slane %v692, 7
        %v695 = vshll.u32 %v641, 16
        %v697 = vor.u32 %v694, %v695
        %v698 = vrot.slane %v694, 4
        %v700 = vshrl.u32 %v642, 16
        %v702 = vrot.slane %v700, 7
        %v703 = vshll.u32 %v642, 16
        %v705 = vor.u32 %v702, %v703
        %v706 = vsel %vm673, %v698, %v705
        %v707 = vrot.slane %v702, 4
        %v709 = vshrl.u32 %v643, 16
        %v711 = vrot.slane %v709, 7
        %v712 = vshll.u32 %v643, 16
        %v714 = vor.u32 %v711, %v712
        %v715 = vrot.slane %v711, 4
        %v717 = vshrl.u32 %v644, 16
        %v719 = vrot.slane %v717, 7
        %v720 = vshll.u32 %v644, 16
        %v722 = vor.u32 %v719, %v720
        %v723 = vsel %vm673, %v715, %v722
        %v724 = vrot.slane %v719, 4
        %v726 = vshrl.u32 %v645, 16
        %v728 = vrot.slane %v726, 7
        %v729 = vshll.u32 %v645, 16
        %v731 = vor.u32 %v728, %v729
        %v732 = vrot.slane %v728, 4
        %v734 = vshrl.u32 %v646, 16
        %v736 = vrot.slane %v734, 7
        %v737 = vshll.u32 %v646, 16
        %v739 = vor.u32 %v736, %v737
        %v740 = vsel %vm673, %v732, %v739
        %v741 = vrot.slane %v736, 4
        %v743 = vshrl.u32 %v647, 16
        %v745 = vrot.slane %v743, 7
        %v746 = vshll.u32 %v647, 16
        %v748 = vor.u32 %v745, %v746
        %v749 = vrot.slane %v745, 4
        %v751 = vshrl.u32 %v648, 16
        %v753 = vrot.slane %v751, 7
        %v754 = vshll.u32 %v648, 16
        %v756 = vor.u32 %v753, %v754
        %v757 = vsel %vm673, %v749, %v756
        %v758 = vrot.slane %v753, 4
        %v760 = vshrl.u32 %v649, 16
        %v762 = vrot.slane %v760, 7
        %v763 = vshll.u32 %v649, 16
        %v765 = vor.u32 %v762, %v763
        %v766 = vrot.slane %v762, 4
        %v768 = vshrl.u32 %v650, 16
        %v770 = vrot.slane %v768, 7
        %v771 = vshll.u32 %v650, 16
        %v773 = vor.u32 %v770, %v771
        %v774 = vsel %vm673, %v766, %v773
        %v775 = vrot.slane %v770, 4
        %v777 = vshrl.u32 %v651, 16
        %v779 = vrot.slane %v777, 7
        %v780 = vshll.u32 %v651, 16
        %v782 = vor.u32 %v779, %v780
        %v783 = vrot.slane %v779, 4
        %v785 = vshrl.u32 %v652, 16
        %v787 = vrot.slane %v785, 7
        %v788 = vshll.u32 %v652, 16
        %v790 = vor.u32 %v787, %v788
        %v791 = vsel %vm673, %v783, %v790
        %v792 = vrot.slane %v787, 4
        %v794 = vshrl.u32 %v653, 16
        %v796 = vrot.slane %v794, 7
        %v797 = vshll.u32 %v653, 16
        %v799 = vor.u32 %v796, %v797
        %v800 = vrot.slane %v796, 4
        %v802 = vshrl.u32 %v654, 16
        %v804 = vrot.slane %v802, 7
        %v805 = vshll.u32 %v654, 16
        %v807 = vor.u32 %v804, %v805
        %v808 = vsel %vm673, %v800, %v807
        %v809 = vrot.slane %v804, 4
        %v811 = vshrl.u32 %v655, 16
        %v813 = vrot.slane %v811, 7
        %v814 = vshll.u32 %v655, 16
        %v816 = vor.u32 %v813, %v814
        %v817 = vrot.slane %v813, 4
        %v819 = vshrl.u32 %v656, 16
        %v821 = vrot.slane %v819, 7
        %v822 = vshll.u32 %v656, 16
        %v824 = vor.u32 %v821, %v822
        %v825 = vsel %vm673, %v817, %v824
        %v826 = vrot.slane %v821, 4
        %v828 = vshrl.u32 %v657, 16
        %v830 = vrot.slane %v828, 7
        %v831 = vshll.u32 %v657, 16
        %v833 = vor.u32 %v830, %v831
        %v834 = vrot.slane %v830, 4
        %v836 = vshrl.u32 %v658, 16
        %v838 = vrot.slane %v836, 7
        %v839 = vshll.u32 %v658, 16
        %v841 = vor.u32 %v838, %v839
        %v842 = vsel %vm673, %v834, %v841
        %v843 = vrot.slane %v838, 4
        %v845 = vshrl.u32 %v659, 16
        %v847 = vrot.slane %v845, 7
        %v848 = vshll.u32 %v659, 16
        %v850 = vor.u32 %v847, %v848
        %v851 = vrot.slane %v847, 4
        %v853 = vshrl.u32 %v660, 16
        %v855 = vrot.slane %v853, 7
        %v856 = vshll.u32 %v660, 16
        %v858 = vor.u32 %v855, %v856
        %v859 = vsel %vm673, %v851, %v858
        %v860 = vrot.slane %v855, 4
        %v862 = vshrl.u32 %v661, 16
        %v864 = vrot.slane %v862, 7
        %v865 = vshll.u32 %v661, 16
        %v867 = vor.u32 %v864, %v865
        %v868 = vrot.slane %v864, 4
        %v870 = vshrl.u32 %v662, 16
        %v872 = vrot.slane %v870, 7
        %v873 = vshll.u32 %v662, 16
        %v875 = vor.u32 %v872, %v873
        %v876 = vsel %vm673, %v868, %v875
        %v877 = vrot.slane %v872, 4
        %v879 = vshrl.u32 %v663, 16
        %v881 = vrot.slane %v879, 7
        %v882 = vshll.u32 %v663, 16
        %v884 = vor.u32 %v881, %v882
        %v885 = vrot.slane %v881, 4
        %v887 = vshrl.u32 %v664, 16
        %v889 = vrot.slane %v887, 7
        %v890 = vshll.u32 %v664, 16
        %v892 = vor.u32 %v889, %v890
        %v893 = vsel %vm673, %v885, %v892
        %v894 = vrot.slane %v889, 4
        %v896 = vshrl.u32 %v665, 16
        %v898 = vrot.slane %v896, 7
        %v899 = vshll.u32 %v665, 16
        %v901 = vor.u32 %v898, %v899
        %v902 = vrot.slane %v898, 4
        %v904 = vshrl.u32 %v666, 16
        %v906 = vrot.slane %v904, 7
        %v907 = vshll.u32 %v666, 16
        %v909 = vor.u32 %v906, %v907
        %v910 = vsel %vm673, %v902, %v909
        %v911 = vrot.slane %v906, 4
        %v913 = vshrl.u32 %v667, 16
        %v915 = vrot.slane %v913, 7
        %v916 = vshll.u32 %v667, 16
        %v918 = vor.u32 %v915, %v916
        %v919 = vrot.slane %v915, 4
        %v921 = vshrl.u32 %v668, 16
        %v923 = vrot.slane %v921, 7
        %v924 = vshll.u32 %v668, 16
        %v926 = vor.u32 %v923, %v924
        %v927 = vsel %vm673, %v919, %v926
        %v928 = vrot.slane %v923, 4
        %v930 = vshrl.u32 %v669, 16
        %v932 = vrot.slane %v930, 7
        %v933 = vshll.u32 %v669, 16
        %v935 = vor.u32 %v932, %v933
        %v936 = vrot.slane %v932, 4
        %v938 = vshrl.u32 %v670, 16
        %v940 = vrot.slane %v938, 7
        %v941 = vshll.u32 %v670, 16
        %v943 = vor.u32 %v940, %v941
        %v944 = vsel %vm673, %v936, %v943
        %v945 = vrot.slane %v940, 4
        %s994 = scalar_lea.vmem [#allocation2], 12
        %vm995 = vcmask 60416
        %vm996 = vsmask.f32 7938
        %vm997 = vmand %vm995, %vm996
        %v998 = vld [vmem:[%s994] sm:$0xf]
        %v999 = vsel %vm997, %v680, %v998
        %1000 = vst [vmem:[%s994] sm:$0xf] %v999
        %1001 = vst.msk [vmem:[%s994 + $0x4] sm:$0xf] %vm230, %v689
        %vm1002 = vcmask 57344
        %vm1003 = vmand %vm1002, %vm671
        %v1004 = vld [vmem:[%s994 + $0x8] sm:$0x1]
        %v1005 = vsel %vm1003, %v690, %v1004
        %1006 = vst [vmem:[%s994 + $0x8] sm:$0x1] %v1005
        %v1007 = vld [vmem:[%s994 + $0xc] sm:$0xf]
        %v1008 = vsel %vm997, %v697, %v1007
        %1009 = vst [vmem:[%s994 + $0xc] sm:$0xf] %v1008
        %1010 = vst.msk [vmem:[%s994 + $0x10] sm:$0xf] %vm230, %v706
        %v1011 = vld [vmem:[%s994 + $0x14] sm:$0x1]
        %v1012 = vsel %vm1003, %v707, %v1011
        %1013 = vst [vmem:[%s994 + $0x14] sm:$0x1] %v1012
        %v1014 = vld [vmem:[%s994 + $0x18] sm:$0xf]
        %v1015 = vsel %vm997, %v714, %v1014
        %1016 = vst [vmem:[%s994 + $0x18] sm:$0xf] %v1015
        %1017 = vst.msk [vmem:[%s994 + $0x1c] sm:$0xf] %vm230, %v723
        %v1018 = vld [vmem:[%s994 + $0x20] sm:$0x1]
        %v1019 = vsel %vm1003, %v724, %v1018
        %1020 = vst [vmem:[%s994 + $0x20] sm:$0x1] %v1019
        %v1021 = vld [vmem:[%s994 + $0x24] sm:$0xf]
        %v1022 = vsel %vm997, %v731, %v1021
        %1023 = vst [vmem:[%s994 + $0x24] sm:$0xf] %v1022
        %1024 = vst.msk [vmem:[%s994 + $0x28] sm:$0xf] %vm230, %v740
        %v1025 = vld [vmem:[%s994 + $0x2c] sm:$0x1]
        %v1026 = vsel %vm1003, %v741, %v1025
        %1027 = vst [vmem:[%s994 + $0x2c] sm:$0x1] %v1026
        %v1028 = vld [vmem:[%s994 + $0x30] sm:$0xf]
        %v1029 = vsel %vm997, %v748, %v1028
        %1030 = vst [vmem:[%s994 + $0x30] sm:$0xf] %v1029
        %1031 = vst.msk [vmem:[%s994 + $0x34] sm:$0xf] %vm230, %v757
        %v1032 = vld [vmem:[%s994 + $0x38] sm:$0x1]
        %v1033 = vsel %vm1003, %v758, %v1032
        %1034 = vst [vmem:[%s994 + $0x38] sm:$0x1] %v1033
        %v1035 = vld [vmem:[%s994 + $0x3c] sm:$0xf]
        %v1036 = vsel %vm997, %v765, %v1035
        %1037 = vst [vmem:[%s994 + $0x3c] sm:$0xf] %v1036
        %1038 = vst.msk [vmem:[%s994 + $0x40] sm:$0xf] %vm230, %v774
        %v1039 = vld [vmem:[%s994 + $0x44] sm:$0x1]
        %v1040 = vsel %vm1003, %v775, %v1039
        %1041 = vst [vmem:[%s994 + $0x44] sm:$0x1] %v1040
        %v1042 = vld [vmem:[%s994 + $0x48] sm:$0xf]
        %v1043 = vsel %vm997, %v782, %v1042
        %1044 = vst [vmem:[%s994 + $0x48] sm:$0xf] %v1043
        %1045 = vst.msk [vmem:[%s994 + $0x4c] sm:$0xf] %vm230, %v791
        %v1046 = vld [vmem:[%s994 + $0x50] sm:$0x1]
        %v1047 = vsel %vm1003, %v792, %v1046
        %1048 = vst [vmem:[%s994 + $0x50] sm:$0x1] %v1047
        %v1049 = vld [vmem:[%s994 + $0x54] sm:$0xf]
        %v1050 = vsel %vm997, %v799, %v1049
        %1051 = vst [vmem:[%s994 + $0x54] sm:$0xf] %v1050
        %1052 = vst.msk [vmem:[%s994 + $0x58] sm:$0xf] %vm230, %v808
        %v1053 = vld [vmem:[%s994 + $0x5c] sm:$0x1]
        %v1054 = vsel %vm1003, %v809, %v1053
        %1055 = vst [vmem:[%s994 + $0x5c] sm:$0x1] %v1054
        %v1056 = vld [vmem:[%s994 + $0x60] sm:$0xf]
        %v1057 = vsel %vm997, %v816, %v1056
        %1058 = vst [vmem:[%s994 + $0x60] sm:$0xf] %v1057
        %1059 = vst.msk [vmem:[%s994 + $0x64] sm:$0xf] %vm230, %v825
        %v1060 = vld [vmem:[%s994 + $0x68] sm:$0x1]
        %v1061 = vsel %vm1003, %v826, %v1060
        %1062 = vst [vmem:[%s994 + $0x68] sm:$0x1] %v1061
        %v1063 = vld [vmem:[%s994 + $0x6c] sm:$0xf]
        %v1064 = vsel %vm997, %v833, %v1063
        %1065 = vst [vmem:[%s994 + $0x6c] sm:$0xf] %v1064
        %1066 = vst.msk [vmem:[%s994 + $0x70] sm:$0xf] %vm230, %v842
        %v1067 = vld [vmem:[%s994 + $0x74] sm:$0x1]
        %v1068 = vsel %vm1003, %v843, %v1067
        %1069 = vst [vmem:[%s994 + $0x74] sm:$0x1] %v1068
        %v1070 = vld [vmem:[%s994 + $0x78] sm:$0xf]
        %v1071 = vsel %vm997, %v850, %v1070
        %1072 = vst [vmem:[%s994 + $0x78] sm:$0xf] %v1071
        %1073 = vst.msk [vmem:[%s994 + $0x7c] sm:$0xf] %vm230, %v859
        %v1074 = vld [vmem:[%s994 + $0x80] sm:$0x1]
        %v1075 = vsel %vm1003, %v860, %v1074
        %1076 = vst [vmem:[%s994 + $0x80] sm:$0x1] %v1075
        %v1077 = vld [vmem:[%s994 + $0x84] sm:$0xf]
        %v1078 = vsel %vm997, %v867, %v1077
        %1079 = vst [vmem:[%s994 + $0x84] sm:$0xf] %v1078
        %1080 = vst.msk [vmem:[%s994 + $0x88] sm:$0xf] %vm230, %v876
        %v1081 = vld [vmem:[%s994 + $0x8c] sm:$0x1]
        %v1082 = vsel %vm1003, %v877, %v1081
        %1083 = vst [vmem:[%s994 + $0x8c] sm:$0x1] %v1082
        %v1084 = vld [vmem:[%s994 + $0x90] sm:$0xf]
        %v1085 = vsel %vm997, %v884, %v1084
        %1086 = vst [vmem:[%s994 + $0x90] sm:$0xf] %v1085
        %1087 = vst.msk [vmem:[%s994 + $0x94] sm:$0xf] %vm230, %v893
        %v1088 = vld [vmem:[%s994 + $0x98] sm:$0x1]
        %v1089 = vsel %vm1003, %v894, %v1088
        %1090 = vst [vmem:[%s994 + $0x98] sm:$0x1] %v1089
        %v1091 = vld [vmem:[%s994 + $0x9c] sm:$0xf]
        %v1092 = vsel %vm997, %v901, %v1091
        %1093 = vst [vmem:[%s994 + $0x9c] sm:$0xf] %v1092
        %1094 = vst.msk [vmem:[%s994 + $0xa0] sm:$0xf] %vm230, %v910
        %v1095 = vld [vmem:[%s994 + $0xa4] sm:$0x1]
        %v1096 = vsel %vm1003, %v911, %v1095
        %1097 = vst [vmem:[%s994 + $0xa4] sm:$0x1] %v1096
        %v1098 = vld [vmem:[%s994 + $0xa8] sm:$0xf]
        %v1099 = vsel %vm997, %v918, %v1098
        %1100 = vst [vmem:[%s994 + $0xa8] sm:$0xf] %v1099
        %1101 = vst.msk [vmem:[%s994 + $0xac] sm:$0xf] %vm230, %v927
        %v1102 = vld [vmem:[%s994 + $0xb0] sm:$0x1]
        %v1103 = vsel %vm1003, %v928, %v1102
        %1104 = vst [vmem:[%s994 + $0xb0] sm:$0x1] %v1103
        %v1105 = vld [vmem:[%s994 + $0xb4] sm:$0xf]
        %v1106 = vsel %vm997, %v935, %v1105
        %1107 = vst [vmem:[%s994 + $0xb4] sm:$0xf] %v1106
        %1108 = vst.msk [vmem:[%s994 + $0xb8] sm:$0xf] %vm230, %v944
        %v1109 = vld [vmem:[%s994 + $0xbc] sm:$0x1]
        %v1110 = vsel %vm1003, %v945, %v1109
        %1111 = vst [vmem:[%s994 + $0xbc] sm:$0x1] %v1110
        %v1112 = vld [vmem:[#allocation2] sm:$0xf]
        %v1113 = vld [vmem:[#allocation2 + $0x4] sm:$0xf]
        %v1114 = vld [vmem:[#allocation2 + $0x8] sm:$0x1]
        %v1115 = vld [vmem:[#allocation2 + $0xc] sm:$0xf]
        %v1116 = vld [vmem:[#allocation2 + $0x10] sm:$0xf]
        %v1117 = vld [vmem:[#allocation2 + $0x14] sm:$0x1]
        %v1118 = vld [vmem:[#allocation2 + $0x18] sm:$0xf]
        %v1119 = vld [vmem:[#allocation2 + $0x1c] sm:$0xf]
        %v1120 = vld [vmem:[#allocation2 + $0x20] sm:$0x1]
        %v1121 = vld [vmem:[#allocation2 + $0x24] sm:$0xf]
        %v1122 = vld [vmem:[#allocation2 + $0x28] sm:$0xf]
        %v1123 = vld [vmem:[#allocation2 + $0x2c] sm:$0x1]
        %v1124 = vld [vmem:[#allocation2 + $0x30] sm:$0xf]
        %v1125 = vld [vmem:[#allocation2 + $0x34] sm:$0xf]
        %v1126 = vld [vmem:[#allocation2 + $0x38] sm:$0x1]
        %v1127 = vld [vmem:[#allocation2 + $0x3c] sm:$0xf]
        %v1128 = vld [vmem:[#allocation2 + $0x40] sm:$0xf]
        %v1129 = vld [vmem:[#allocation2 + $0x44] sm:$0x1]
        %v1130 = vld [vmem:[#allocation2 + $0x48] sm:$0xf]
        %v1131 = vld [vmem:[#allocation2 + $0x4c] sm:$0xf]
        %v1132 = vld [vmem:[#allocation2 + $0x50] sm:$0x1]
        %v1133 = vld [vmem:[#allocation2 + $0x54] sm:$0xf]
        %v1134 = vld [vmem:[#allocation2 + $0x58] sm:$0xf]
        %v1135 = vld [vmem:[#allocation2 + $0x5c] sm:$0x1]
        %v1136 = vld [vmem:[#allocation2 + $0x60] sm:$0xf]
        %v1137 = vld [vmem:[#allocation2 + $0x64] sm:$0xf]
        %v1138 = vld [vmem:[#allocation2 + $0x68] sm:$0x1]
        %v1139 = vld [vmem:[#allocation2 + $0x6c] sm:$0xf]
        %v1140 = vld [vmem:[#allocation2 + $0x70] sm:$0xf]
        %v1141 = vld [vmem:[#allocation2 + $0x74] sm:$0x1]
        %v1142 = vld [vmem:[#allocation2 + $0x78] sm:$0xf]
        %v1143 = vld [vmem:[#allocation2 + $0x7c] sm:$0xf]
        %v1144 = vld [vmem:[#allocation2 + $0x80] sm:$0x1]
        %v1145 = vld [vmem:[#allocation2 + $0x84] sm:$0xf]
        %v1146 = vld [vmem:[#allocation2 + $0x88] sm:$0xf]
        %v1147 = vld [vmem:[#allocation2 + $0x8c] sm:$0x1]
        %v1148 = vld [vmem:[#allocation2 + $0x90] sm:$0xf]
        %v1149 = vld [vmem:[#allocation2 + $0x94] sm:$0xf]
        %v1150 = vld [vmem:[#allocation2 + $0x98] sm:$0x1]
        %v1151 = vld [vmem:[#allocation2 + $0x9c] sm:$0xf]
        %v1152 = vld [vmem:[#allocation2 + $0xa0] sm:$0xf]
        %v1153 = vld [vmem:[#allocation2 + $0xa4] sm:$0x1]
        %v1154 = vld [vmem:[#allocation2 + $0xa8] sm:$0xf]
        %v1155 = vld [vmem:[#allocation2 + $0xac] sm:$0xf]
        %v1156 = vld [vmem:[#allocation2 + $0xb0] sm:$0x1]
        %v1157 = vld [vmem:[#allocation2 + $0xb4] sm:$0xf]
        %v1158 = vld [vmem:[#allocation2 + $0xb8] sm:$0xf]
        %v1159 = vld [vmem:[#allocation2 + $0xbc] sm:$0x1]
        %v1160 = vld [vmem:[#allocation2 + $0xc0] sm:$0xf]
        %v1161 = vld [vmem:[#allocation2 + $0xc4] sm:$0xf]
        %v1162 = vld [vmem:[#allocation2 + $0xc8] sm:$0x1]
        %v1163 = vld [vmem:[#allocation2 + $0xcc] sm:$0xf]
        %v1164 = vld [vmem:[#allocation2 + $0xd0] sm:$0xf]
        %v1165 = vld [vmem:[#allocation2 + $0xd4] sm:$0x1]
        %v1198 = vunpack.c.l.b16 %v1112
        %v1199 = vunpack.c.l.b16 %v1113
        %v1200 = vunpack.c.l.b16 %v1115
        %v1201 = vunpack.c.l.b16 %v1116
        %v1202 = vunpack.c.l.b16 %v1118
        %v1203 = vunpack.c.l.b16 %v1119
        %v1204 = vunpack.c.l.b16 %v1121
        %v1205 = vunpack.c.l.b16 %v1122
        %v1206 = vunpack.c.l.b16 %v1124
        %v1207 = vunpack.c.l.b16 %v1125
        %v1208 = vunpack.c.l.b16 %v1127
        %v1209 = vunpack.c.l.b16 %v1128
        %v1210 = vunpack.c.l.b16 %v1130
        %v1211 = vunpack.c.l.b16 %v1131
        %v1212 = vunpack.c.l.b16 %v1133
        %v1213 = vunpack.c.l.b16 %v1134
        %v1214 = vunpack.c.l.b16 %v1136
        %v1215 = vunpack.c.l.b16 %v1137
        %v1216 = vunpack.c.l.b16 %v1139
        %v1217 = vunpack.c.l.b16 %v1140
        %v1218 = vunpack.c.l.b16 %v1142
        %v1219 = vunpack.c.l.b16 %v1143
        %v1220 = vunpack.c.l.b16 %v1145
        %v1221 = vunpack.c.l.b16 %v1146
        %v1222 = vunpack.c.l.b16 %v1148
        %v1223 = vunpack.c.l.b16 %v1149
        %v1224 = vunpack.c.l.b16 %v1151
        %v1225 = vunpack.c.l.b16 %v1152
        %v1226 = vunpack.c.l.b16 %v1154
        %v1227 = vunpack.c.l.b16 %v1155
        %v1228 = vunpack.c.l.b16 %v1157
        %v1229 = vunpack.c.l.b16 %v1158
        %v1230 = vpack.c.b16 %v1199, %v1198
        %v1231 = vpack.c.b16 %v1201, %v1200
        %v1232 = vpack.c.b16 %v1203, %v1202
        %v1233 = vpack.c.b16 %v1205, %v1204
        %v1234 = vpack.c.b16 %v1207, %v1206
        %v1235 = vpack.c.b16 %v1209, %v1208
        %v1236 = vpack.c.b16 %v1211, %v1210
        %v1237 = vpack.c.b16 %v1213, %v1212
        %v1238 = vpack.c.b16 %v1215, %v1214
        %v1239 = vpack.c.b16 %v1217, %v1216
        %v1240 = vpack.c.b16 %v1219, %v1218
        %v1241 = vpack.c.b16 %v1221, %v1220
        %v1242 = vpack.c.b16 %v1223, %v1222
        %v1243 = vpack.c.b16 %v1225, %v1224
        %v1244 = vpack.c.b16 %v1227, %v1226
        %v1245 = vpack.c.b16 %v1229, %v1228
        %v1262 = vunpack.c.l.b16 %v1114
        %v1263 = vunpack.c.l.b16 %v1117
        %v1264 = vunpack.c.l.b16 %v1120
        %v1265 = vunpack.c.l.b16 %v1123
        %v1266 = vunpack.c.l.b16 %v1126
        %v1267 = vunpack.c.l.b16 %v1129
        %v1268 = vunpack.c.l.b16 %v1132
        %v1269 = vunpack.c.l.b16 %v1135
        %v1270 = vunpack.c.l.b16 %v1138
        %v1271 = vunpack.c.l.b16 %v1141
        %v1272 = vunpack.c.l.b16 %v1144
        %v1273 = vunpack.c.l.b16 %v1147
        %v1274 = vunpack.c.l.b16 %v1150
        %v1275 = vunpack.c.l.b16 %v1153
        %v1276 = vunpack.c.l.b16 %v1156
        %v1277 = vunpack.c.l.b16 %v1159
        %v1278 = vpack.c.b16 %v1262, %v1262
        %v1279 = vpack.c.b16 %v1263, %v1263
        %v1280 = vpack.c.b16 %v1264, %v1264
        %v1281 = vpack.c.b16 %v1265, %v1265
        %v1282 = vpack.c.b16 %v1266, %v1266
        %v1283 = vpack.c.b16 %v1267, %v1267
        %v1284 = vpack.c.b16 %v1268, %v1268
        %v1285 = vpack.c.b16 %v1269, %v1269
        %v1286 = vpack.c.b16 %v1270, %v1270
        %v1287 = vpack.c.b16 %v1271, %v1271
        %v1288 = vpack.c.b16 %v1272, %v1272
        %v1289 = vpack.c.b16 %v1273, %v1273
        %v1290 = vpack.c.b16 %v1274, %v1274
        %v1291 = vpack.c.b16 %v1275, %v1275
        %v1292 = vpack.c.b16 %v1276, %v1276
        %v1293 = vpack.c.b16 %v1277, %v1277
        %vm1294 = vsmask.f32 7424
        %v1296 = vshrl.u32 %v1230, 16
        %v1298 = vshll.u32 %v1230, 16
        %v1300 = vrot.slane %v1298, 1
        %v1301 = vor.u32 %v1296, %v1300
        %v1303 = vshll.u32 %v1278, 16
        %v1305 = vrot.slane %v1303, 1
        %v1306 = vsel %vm1294, %v1301, %v1305
        %v1308 = vshrl.u32 %v1231, 16
        %v1310 = vshll.u32 %v1231, 16
        %v1312 = vrot.slane %v1310, 1
        %v1313 = vor.u32 %v1308, %v1312
        %v1315 = vshll.u32 %v1279, 16
        %v1317 = vrot.slane %v1315, 1
        %v1318 = vsel %vm1294, %v1313, %v1317
        %v1320 = vshrl.u32 %v1232, 16
        %v1322 = vshll.u32 %v1232, 16
        %v1324 = vrot.slane %v1322, 1
        %v1325 = vor.u32 %v1320, %v1324
        %v1327 = vshll.u32 %v1280, 16
        %v1329 = vrot.slane %v1327, 1
        %v1330 = vsel %vm1294, %v1325, %v1329
        %v1332 = vshrl.u32 %v1233, 16
        %v1334 = vshll.u32 %v1233, 16
        %v1336 = vrot.slane %v1334, 1
        %v1337 = vor.u32 %v1332, %v1336
        %v1339 = vshll.u32 %v1281, 16
        %v1341 = vrot.slane %v1339, 1
        %v1342 = vsel %vm1294, %v1337, %v1341
        %v1344 = vshrl.u32 %v1234, 16
        %v1346 = vshll.u32 %v1234, 16
        %v1348 = vrot.slane %v1346, 1
        %v1349 = vor.u32 %v1344, %v1348
        %v1351 = vshll.u32 %v1282, 16
        %v1353 = vrot.slane %v1351, 1
        %v1354 = vsel %vm1294, %v1349, %v1353
        %v1356 = vshrl.u32 %v1235, 16
        %v1358 = vshll.u32 %v1235, 16
        %v1360 = vrot.slane %v1358, 1
        %v1361 = vor.u32 %v1356, %v1360
        %v1363 = vshll.u32 %v1283, 16
        %v1365 = vrot.slane %v1363, 1
        %v1366 = vsel %vm1294, %v1361, %v1365
        %v1368 = vshrl.u32 %v1236, 16
        %v1370 = vshll.u32 %v1236, 16
        %v1372 = vrot.slane %v1370, 1
        %v1373 = vor.u32 %v1368, %v1372
        %v1375 = vshll.u32 %v1284, 16
        %v1377 = vrot.slane %v1375, 1
        %v1378 = vsel %vm1294, %v1373, %v1377
        %v1380 = vshrl.u32 %v1237, 16
        %v1382 = vshll.u32 %v1237, 16
        %v1384 = vrot.slane %v1382, 1
        %v1385 = vor.u32 %v1380, %v1384
        %v1387 = vshll.u32 %v1285, 16
        %v1389 = vrot.slane %v1387, 1
        %v1390 = vsel %vm1294, %v1385, %v1389
        %v1392 = vshrl.u32 %v1238, 16
        %v1394 = vshll.u32 %v1238, 16
        %v1396 = vrot.slane %v1394, 1
        %v1397 = vor.u32 %v1392, %v1396
        %v1399 = vshll.u32 %v1286, 16
        %v1401 = vrot.slane %v1399, 1
        %v1402 = vsel %vm1294, %v1397, %v1401
        %v1404 = vshrl.u32 %v1239, 16
        %v1406 = vshll.u32 %v1239, 16
        %v1408 = vrot.slane %v1406, 1
        %v1409 = vor.u32 %v1404, %v1408
        %v1411 = vshll.u32 %v1287, 16
        %v1413 = vrot.slane %v1411, 1
        %v1414 = vsel %vm1294, %v1409, %v1413
        %v1416 = vshrl.u32 %v1240, 16
        %v1418 = vshll.u32 %v1240, 16
        %v1420 = vrot.slane %v1418, 1
        %v1421 = vor.u32 %v1416, %v1420
        %v1423 = vshll.u32 %v1288, 16
        %v1425 = vrot.slane %v1423, 1
        %v1426 = vsel %vm1294, %v1421, %v1425
        %v1428 = vshrl.u32 %v1241, 16
        %v1430 = vshll.u32 %v1241, 16
        %v1432 = vrot.slane %v1430, 1
        %v1433 = vor.u32 %v1428, %v1432
        %v1435 = vshll.u32 %v1289, 16
        %v1437 = vrot.slane %v1435, 1
        %v1438 = vsel %vm1294, %v1433, %v1437
        %v1440 = vshrl.u32 %v1242, 16
        %v1442 = vshll.u32 %v1242, 16
        %v1444 = vrot.slane %v1442, 1
        %v1445 = vor.u32 %v1440, %v1444
        %v1447 = vshll.u32 %v1290, 16
        %v1449 = vrot.slane %v1447, 1
        %v1450 = vsel %vm1294, %v1445, %v1449
        %v1452 = vshrl.u32 %v1243, 16
        %v1454 = vshll.u32 %v1243, 16
        %v1456 = vrot.slane %v1454, 1
        %v1457 = vor.u32 %v1452, %v1456
        %v1459 = vshll.u32 %v1291, 16
        %v1461 = vrot.slane %v1459, 1
        %v1462 = vsel %vm1294, %v1457, %v1461
        %v1464 = vshrl.u32 %v1244, 16
        %v1466 = vshll.u32 %v1244, 16
        %v1468 = vrot.slane %v1466, 1
        %v1469 = vor.u32 %v1464, %v1468
        %v1471 = vshll.u32 %v1292, 16
        %v1473 = vrot.slane %v1471, 1
        %v1474 = vsel %vm1294, %v1469, %v1473
        %v1476 = vshrl.u32 %v1245, 16
        %v1478 = vshll.u32 %v1245, 16
        %v1480 = vrot.slane %v1478, 1
        %v1481 = vor.u32 %v1476, %v1480
        %v1483 = vshll.u32 %v1293, 16
        %v1485 = vrot.slane %v1483, 1
        %v1486 = vsel %vm1294, %v1481, %v1485
        %1487 = vrot.lane.b32.xlu0 %v1306, 8
        %v1488 = vpop.permute.xlu0 %1487
        %1489 = vrot.lane.b32.xlu0 %v1318, 8
        %v1490 = vpop.permute.xlu0 %1489
        %1491 = vrot.lane.b32.xlu0 %v1330, 8
        %v1492 = vpop.permute.xlu0 %1491
        %1493 = vrot.lane.b32.xlu0 %v1342, 8
        %v1494 = vpop.permute.xlu0 %1493
        %1495 = vrot.lane.b32.xlu0 %v1354, 8
        %v1496 = vpop.permute.xlu0 %1495
        %1497 = vrot.lane.b32.xlu0 %v1366, 8
        %v1498 = vpop.permute.xlu0 %1497
        %1499 = vrot.lane.b32.xlu0 %v1378, 8
        %v1500 = vpop.permute.xlu0 %1499
        %1501 = vrot.lane.b32.xlu0 %v1390, 8
        %v1502 = vpop.permute.xlu0 %1501
        %1503 = vrot.lane.b32.xlu0 %v1402, 8
        %v1504 = vpop.permute.xlu0 %1503
        %1505 = vrot.lane.b32.xlu0 %v1414, 8
        %v1506 = vpop.permute.xlu0 %1505
        %1507 = vrot.lane.b32.xlu0 %v1426, 8
        %v1508 = vpop.permute.xlu0 %1507
        %1509 = vrot.lane.b32.xlu0 %v1438, 8
        %v1510 = vpop.permute.xlu0 %1509
        %1511 = vrot.lane.b32.xlu0 %v1450, 8
        %v1512 = vpop.permute.xlu0 %1511
        %1513 = vrot.lane.b32.xlu0 %v1462, 8
        %v1514 = vpop.permute.xlu0 %1513
        %1515 = vrot.lane.b32.xlu0 %v1474, 8
        %v1516 = vpop.permute.xlu0 %1515
        %1517 = vrot.lane.b32.xlu0 %v1486, 8
        %v1518 = vpop.permute.xlu0 %1517
        %vm1519 = vcmask 1046528
        %v1520 = vrot.slane %v1230, 1
        %v1521 = vrot.slane %v1278, 1
        %v1522 = vsel %vm1519, %v1520, %v1521
        %v1523 = vrot.slane %v1231, 1
        %v1524 = vrot.slane %v1279, 1
        %v1525 = vsel %vm1519, %v1523, %v1524
        %v1526 = vrot.slane %v1232, 1
        %v1527 = vrot.slane %v1280, 1
        %v1528 = vsel %vm1519, %v1526, %v1527
        %v1529 = vrot.slane %v1233, 1
        %v1530 = vrot.slane %v1281, 1
        %v1531 = vsel %vm1519, %v1529, %v1530
        %v1532 = vrot.slane %v1234, 1
        %v1533 = vrot.slane %v1282, 1
        %v1534 = vsel %vm1519, %v1532, %v1533
        %v1535 = vrot.slane %v1235, 1
        %v1536 = vrot.slane %v1283, 1
        %v1537 = vsel %vm1519, %v1535, %v1536
        %v1538 = vrot.slane %v1236, 1
        %v1539 = vrot.slane %v1284, 1
        %v1540 = vsel %vm1519, %v1538, %v1539
        %v1541 = vrot.slane %v1237, 1
        %v1542 = vrot.slane %v1285, 1
        %v1543 = vsel %vm1519, %v1541, %v1542
        %v1544 = vrot.slane %v1238, 1
        %v1545 = vrot.slane %v1286, 1
        %v1546 = vsel %vm1519, %v1544, %v1545
        %v1547 = vrot.slane %v1239, 1
        %v1548 = vrot.slane %v1287, 1
        %v1549 = vsel %vm1519, %v1547, %v1548
        %v1550 = vrot.slane %v1240, 1
        %v1551 = vrot.slane %v1288, 1
        %v1552 = vsel %vm1519, %v1550, %v1551
        %v1553 = vrot.slane %v1241, 1
        %v1554 = vrot.slane %v1289, 1
        %v1555 = vsel %vm1519, %v1553, %v1554
        %v1556 = vrot.slane %v1242, 1
        %v1557 = vrot.slane %v1290, 1
        %v1558 = vsel %vm1519, %v1556, %v1557
        %v1559 = vrot.slane %v1243, 1
        %v1560 = vrot.slane %v1291, 1
        %v1561 = vsel %vm1519, %v1559, %v1560
        %v1562 = vrot.slane %v1244, 1
        %v1563 = vrot.slane %v1292, 1
        %v1564 = vsel %vm1519, %v1562, %v1563
        %v1565 = vrot.slane %v1245, 1
        %v1566 = vrot.slane %v1293, 1
        %v1567 = vsel %vm1519, %v1565, %v1566
        %1568 = vrot.lane.b32.xlu0 %v1522, 16
        %v1569 = vpop.permute.xlu0 %1568
        %1570 = vrot.lane.b32.xlu0 %v1525, 16
        %v1571 = vpop.permute.xlu0 %1570
        %1572 = vrot.lane.b32.xlu0 %v1528, 16
        %v1573 = vpop.permute.xlu0 %1572
        %1574 = vrot.lane.b32.xlu0 %v1531, 16
        %v1575 = vpop.permute.xlu0 %1574
        %1576 = vrot.lane.b32.xlu0 %v1534, 16
        %v1577 = vpop.permute.xlu0 %1576
        %1578 = vrot.lane.b32.xlu0 %v1537, 16
        %v1579 = vpop.permute.xlu0 %1578
        %1580 = vrot.lane.b32.xlu0 %v1540, 16
        %v1581 = vpop.permute.xlu0 %1580
        %1582 = vrot.lane.b32.xlu0 %v1543, 16
        %v1583 = vpop.permute.xlu0 %1582
        %1584 = vrot.lane.b32.xlu0 %v1546, 16
        %v1585 = vpop.permute.xlu0 %1584
        %1586 = vrot.lane.b32.xlu0 %v1549, 16
        %v1587 = vpop.permute.xlu0 %1586
        %1588 = vrot.lane.b32.xlu0 %v1552, 16
        %v1589 = vpop.permute.xlu0 %1588
        %1590 = vrot.lane.b32.xlu0 %v1555, 16
        %v1591 = vpop.permute.xlu0 %1590
        %1592 = vrot.lane.b32.xlu0 %v1558, 16
        %v1593 = vpop.permute.xlu0 %1592
        %1594 = vrot.lane.b32.xlu0 %v1561, 16
        %v1595 = vpop.permute.xlu0 %1594
        %1596 = vrot.lane.b32.xlu0 %v1564, 16
        %v1597 = vpop.permute.xlu0 %1596
        %1598 = vrot.lane.b32.xlu0 %v1567, 16
        %v1599 = vpop.permute.xlu0 %1598
        %v1602 = vunpack.c.l.b16 %v1160
        %v1603 = vunpack.c.l.b16 %v1161
        %v1604 = vpack.c.b16 %v1603, %v1602
        %1605 = vrot.lane.b32.xlu0 %v1231, 24
        %v1606 = vpop.permute.xlu0 %1605
        %1607 = vrot.lane.b32.xlu0 %v1232, 24
        %v1608 = vpop.permute.xlu0 %1607
        %1609 = vrot.lane.b32.xlu0 %v1233, 24
        %v1610 = vpop.permute.xlu0 %1609
        %1611 = vrot.lane.b32.xlu0 %v1234, 24
        %v1612 = vpop.permute.xlu0 %1611
        %1613 = vrot.lane.b32.xlu0 %v1235, 24
        %v1614 = vpop.permute.xlu0 %1613
        %1615 = vrot.lane.b32.xlu0 %v1236, 24
        %v1616 = vpop.permute.xlu0 %1615
        %1617 = vrot.lane.b32.xlu0 %v1237, 24
        %v1618 = vpop.permute.xlu0 %1617
        %1619 = vrot.lane.b32.xlu0 %v1238, 24
        %v1620 = vpop.permute.xlu0 %1619
        %1621 = vrot.lane.b32.xlu0 %v1239, 24
        %v1622 = vpop.permute.xlu0 %1621
        %1623 = vrot.lane.b32.xlu0 %v1240, 24
        %v1624 = vpop.permute.xlu0 %1623
        %1625 = vrot.lane.b32.xlu0 %v1241, 24
        %v1626 = vpop.permute.xlu0 %1625
        %1627 = vrot.lane.b32.xlu0 %v1242, 24
        %v1628 = vpop.permute.xlu0 %1627
        %1629 = vrot.lane.b32.xlu0 %v1243, 24
        %v1630 = vpop.permute.xlu0 %1629
        %1631 = vrot.lane.b32.xlu0 %v1244, 24
        %v1632 = vpop.permute.xlu0 %1631
        %1633 = vrot.lane.b32.xlu0 %v1245, 24
        %v1634 = vpop.permute.xlu0 %1633
        %1635 = vrot.lane.b32.xlu0 %v1604, 24
        %v1636 = vpop.permute.xlu0 %1635
        %v1638 = vunpack.c.l.b16 %v1162
        %v1639 = vpack.c.b16 %v1638, %v1638
        %v1641 = vshrl.u32 %v1604, 16
        %v1643 = vshll.u32 %v1604, 16
        %v1645 = vrot.slane %v1643, 1
        %v1646 = vor.u32 %v1641, %v1645
        %v1648 = vshll.u32 %v1639, 16
        %v1650 = vrot.slane %v1648, 1
        %v1651 = vsel %vm1294, %v1646, %v1650
        %1652 = vrot.lane.b32.xlu0 %v1318, 32
        %v1653 = vpop.permute.xlu0 %1652
        %1654 = vrot.lane.b32.xlu0 %v1330, 32
        %v1655 = vpop.permute.xlu0 %1654
        %1656 = vrot.lane.b32.xlu0 %v1342, 32
        %v1657 = vpop.permute.xlu0 %1656
        %1658 = vrot.lane.b32.xlu0 %v1354, 32
        %v1659 = vpop.permute.xlu0 %1658
        %1660 = vrot.lane.b32.xlu0 %v1366, 32
        %v1661 = vpop.permute.xlu0 %1660
        %1662 = vrot.lane.b32.xlu0 %v1378, 32
        %v1663 = vpop.permute.xlu0 %1662
        %1664 = vrot.lane.b32.xlu0 %v1390, 32
        %v1665 = vpop.permute.xlu0 %1664
        %1666 = vrot.lane.b32.xlu0 %v1402, 32
        %v1667 = vpop.permute.xlu0 %1666
        %1668 = vrot.lane.b32.xlu0 %v1414, 32
        %v1669 = vpop.permute.xlu0 %1668
        %1670 = vrot.lane.b32.xlu0 %v1426, 32
        %v1671 = vpop.permute.xlu0 %1670
        %1672 = vrot.lane.b32.xlu0 %v1438, 32
        %v1673 = vpop.permute.xlu0 %1672
        %1674 = vrot.lane.b32.xlu0 %v1450, 32
        %v1675 = vpop.permute.xlu0 %1674
        %1676 = vrot.lane.b32.xlu0 %v1462, 32
        %v1677 = vpop.permute.xlu0 %1676
        %1678 = vrot.lane.b32.xlu0 %v1474, 32
        %v1679 = vpop.permute.xlu0 %1678
        %1680 = vrot.lane.b32.xlu0 %v1486, 32
        %v1681 = vpop.permute.xlu0 %1680
        %1682 = vrot.lane.b32.xlu0 %v1651, 32
        %v1683 = vpop.permute.xlu0 %1682
        %v1684 = vrot.slane %v1604, 1
        %v1685 = vrot.slane %v1639, 1
        %v1686 = vsel %vm1519, %v1684, %v1685
        %1687 = vrot.lane.b32.xlu0 %v1525, 40
        %v1688 = vpop.permute.xlu0 %1687
        %1689 = vrot.lane.b32.xlu0 %v1528, 40
        %v1690 = vpop.permute.xlu0 %1689
        %1691 = vrot.lane.b32.xlu0 %v1531, 40
        %v1692 = vpop.permute.xlu0 %1691
        %1693 = vrot.lane.b32.xlu0 %v1534, 40
        %v1694 = vpop.permute.xlu0 %1693
        %1695 = vrot.lane.b32.xlu0 %v1537, 40
        %v1696 = vpop.permute.xlu0 %1695
        %1697 = vrot.lane.b32.xlu0 %v1540, 40
        %v1698 = vpop.permute.xlu0 %1697
        %1699 = vrot.lane.b32.xlu0 %v1543, 40
        %v1700 = vpop.permute.xlu0 %1699
        %1701 = vrot.lane.b32.xlu0 %v1546, 40
        %v1702 = vpop.permute.xlu0 %1701
        %1703 = vrot.lane.b32.xlu0 %v1549, 40
        %v1704 = vpop.permute.xlu0 %1703
        %1705 = vrot.lane.b32.xlu0 %v1552, 40
        %v1706 = vpop.permute.xlu0 %1705
        %1707 = vrot.lane.b32.xlu0 %v1555, 40
        %v1708 = vpop.permute.xlu0 %1707
        %1709 = vrot.lane.b32.xlu0 %v1558, 40
        %v1710 = vpop.permute.xlu0 %1709
        %1711 = vrot.lane.b32.xlu0 %v1561, 40
        %v1712 = vpop.permute.xlu0 %1711
        %1713 = vrot.lane.b32.xlu0 %v1564, 40
        %v1714 = vpop.permute.xlu0 %1713
        %1715 = vrot.lane.b32.xlu0 %v1567, 40
        %v1716 = vpop.permute.xlu0 %1715
        %1717 = vrot.lane.b32.xlu0 %v1686, 40
        %v1718 = vpop.permute.xlu0 %1717
        %v1721 = vunpack.c.l.b16 %v1163
        %v1722 = vunpack.c.l.b16 %v1164
        %v1723 = vpack.c.b16 %v1722, %v1721
        %1724 = vrot.lane.b32.xlu0 %v1232, 48
        %v1725 = vpop.permute.xlu0 %1724
        %1726 = vrot.lane.b32.xlu0 %v1233, 48
        %v1727 = vpop.permute.xlu0 %1726
        %1728 = vrot.lane.b32.xlu0 %v1234, 48
        %v1729 = vpop.permute.xlu0 %1728
        %1730 = vrot.lane.b32.xlu0 %v1235, 48
        %v1731 = vpop.permute.xlu0 %1730
        %1732 = vrot.lane.b32.xlu0 %v1236, 48
        %v1733 = vpop.permute.xlu0 %1732
        %1734 = vrot.lane.b32.xlu0 %v1237, 48
        %v1735 = vpop.permute.xlu0 %1734
        %1736 = vrot.lane.b32.xlu0 %v1238, 48
        %v1737 = vpop.permute.xlu0 %1736
        %1738 = vrot.lane.b32.xlu0 %v1239, 48
        %v1739 = vpop.permute.xlu0 %1738
        %1740 = vrot.lane.b32.xlu0 %v1240, 48
        %v1741 = vpop.permute.xlu0 %1740
        %1742 = vrot.lane.b32.xlu0 %v1241, 48
        %v1743 = vpop.permute.xlu0 %1742
        %1744 = vrot.lane.b32.xlu0 %v1242, 48
        %v1745 = vpop.permute.xlu0 %1744
        %1746 = vrot.lane.b32.xlu0 %v1243, 48
        %v1747 = vpop.permute.xlu0 %1746
        %1748 = vrot.lane.b32.xlu0 %v1244, 48
        %v1749 = vpop.permute.xlu0 %1748
        %1750 = vrot.lane.b32.xlu0 %v1245, 48
        %v1751 = vpop.permute.xlu0 %1750
        %1752 = vrot.lane.b32.xlu0 %v1604, 48
        %v1753 = vpop.permute.xlu0 %1752
        %1754 = vrot.lane.b32.xlu0 %v1723, 48
        %v1755 = vpop.permute.xlu0 %1754
        %v1757 = vunpack.c.l.b16 %v1165
        %v1758 = vpack.c.b16 %v1757, %v1757
        %v1760 = vshrl.u32 %v1723, 16
        %v1762 = vshll.u32 %v1723, 16
        %v1764 = vrot.slane %v1762, 1
        %v1765 = vor.u32 %v1760, %v1764
        %v1767 = vshll.u32 %v1758, 16
        %v1769 = vrot.slane %v1767, 1
        %v1770 = vsel %vm1294, %v1765, %v1769
        %1771 = vrot.lane.b32.xlu0 %v1330, 56
        %v1772 = vpop.permute.xlu0 %1771
        %1773 = vrot.lane.b32.xlu0 %v1342, 56
        %v1774 = vpop.permute.xlu0 %1773
        %1775 = vrot.lane.b32.xlu0 %v1354, 56
        %v1776 = vpop.permute.xlu0 %1775
        %1777 = vrot.lane.b32.xlu0 %v1366, 56
        %v1778 = vpop.permute.xlu0 %1777
        %1779 = vrot.lane.b32.xlu0 %v1378, 56
        %v1780 = vpop.permute.xlu0 %1779
        %1781 = vrot.lane.b32.xlu0 %v1390, 56
        %v1782 = vpop.permute.xlu0 %1781
        %1783 = vrot.lane.b32.xlu0 %v1402, 56
        %v1784 = vpop.permute.xlu0 %1783
        %1785 = vrot.lane.b32.xlu0 %v1414, 56
        %v1786 = vpop.permute.xlu0 %1785
        %1787 = vrot.lane.b32.xlu0 %v1426, 56
        %v1788 = vpop.permute.xlu0 %1787
        %1789 = vrot.lane.b32.xlu0 %v1438, 56
        %v1790 = vpop.permute.xlu0 %1789
        %1791 = vrot.lane.b32.xlu0 %v1450, 56
        %v1792 = vpop.permute.xlu0 %1791
        %1793 = vrot.lane.b32.xlu0 %v1462, 56
        %v1794 = vpop.permute.xlu0 %1793
        %1795 = vrot.lane.b32.xlu0 %v1474, 56
        %v1796 = vpop.permute.xlu0 %1795
        %1797 = vrot.lane.b32.xlu0 %v1486, 56
        %v1798 = vpop.permute.xlu0 %1797
        %1799 = vrot.lane.b32.xlu0 %v1651, 56
        %v1800 = vpop.permute.xlu0 %1799
        %1801 = vrot.lane.b32.xlu0 %v1770, 56
        %v1802 = vpop.permute.xlu0 %1801
        %v1803 = vrot.slane %v1723, 1
        %v1804 = vrot.slane %v1758, 1
        %v1805 = vsel %vm1519, %v1803, %v1804
        %1806 = vrot.lane.b32.xlu0 %v1528, 64
        %v1807 = vpop.permute.xlu0 %1806
        %1808 = vrot.lane.b32.xlu0 %v1531, 64
        %v1809 = vpop.permute.xlu0 %1808
        %1810 = vrot.lane.b32.xlu0 %v1534, 64
        %v1811 = vpop.permute.xlu0 %1810
        %1812 = vrot.lane.b32.xlu0 %v1537, 64
        %v1813 = vpop.permute.xlu0 %1812
        %1814 = vrot.lane.b32.xlu0 %v1540, 64
        %v1815 = vpop.permute.xlu0 %1814
        %1816 = vrot.lane.b32.xlu0 %v1543, 64
        %v1817 = vpop.permute.xlu0 %1816
        %1818 = vrot.lane.b32.xlu0 %v1546, 64
        %v1819 = vpop.permute.xlu0 %1818
        %1820 = vrot.lane.b32.xlu0 %v1549, 64
        %v1821 = vpop.permute.xlu0 %1820
        %1822 = vrot.lane.b32.xlu0 %v1552, 64
        %v1823 = vpop.permute.xlu0 %1822
        %1824 = vrot.lane.b32.xlu0 %v1555, 64
        %v1825 = vpop.permute.xlu0 %1824
        %1826 = vrot.lane.b32.xlu0 %v1558, 64
        %v1827 = vpop.permute.xlu0 %1826
        %1828 = vrot.lane.b32.xlu0 %v1561, 64
        %v1829 = vpop.permute.xlu0 %1828
        %1830 = vrot.lane.b32.xlu0 %v1564, 64
        %v1831 = vpop.permute.xlu0 %1830
        %1832 = vrot.lane.b32.xlu0 %v1567, 64
        %v1833 = vpop.permute.xlu0 %1832
        %1834 = vrot.lane.b32.xlu0 %v1686, 64
        %v1835 = vpop.permute.xlu0 %1834
        %1836 = vrot.lane.b32.xlu0 %v1805, 64
        %v1837 = vpop.permute.xlu0 %1836
        %vm1838 = vcmask 64512
        %v1840 = vsel %vm1838, %v1230, %v1488
        %v1842 = vsel %vm1838, %v1231, %v1490
        %v1844 = vsel %vm1838, %v1232, %v1492
        %v1846 = vsel %vm1838, %v1233, %v1494
        %v1848 = vsel %vm1838, %v1234, %v1496
        %v1850 = vsel %vm1838, %v1235, %v1498
        %v1852 = vsel %vm1838, %v1236, %v1500
        %v1854 = vsel %vm1838, %v1237, %v1502
        %v1856 = vsel %vm1838, %v1238, %v1504
        %v1858 = vsel %vm1838, %v1239, %v1506
        %v1860 = vsel %vm1838, %v1240, %v1508
        %v1862 = vsel %vm1838, %v1241, %v1510
        %v1864 = vsel %vm1838, %v1242, %v1512
        %v1866 = vsel %vm1838, %v1243, %v1514
        %v1868 = vsel %vm1838, %v1244, %v1516
        %v1870 = vsel %vm1838, %v1245, %v1518
        %vm1871 = vcmask 130048
        %v1873 = vsel %vm1871, %v1840, %v1569
        %v1875 = vsel %vm1871, %v1842, %v1571
        %v1877 = vsel %vm1871, %v1844, %v1573
        %v1879 = vsel %vm1871, %v1846, %v1575
        %v1881 = vsel %vm1871, %v1848, %v1577
        %v1883 = vsel %vm1871, %v1850, %v1579
        %v1885 = vsel %vm1871, %v1852, %v1581
        %v1887 = vsel %vm1871, %v1854, %v1583
        %v1889 = vsel %vm1871, %v1856, %v1585
        %v1891 = vsel %vm1871, %v1858, %v1587
        %v1893 = vsel %vm1871, %v1860, %v1589
        %v1895 = vsel %vm1871, %v1862, %v1591
        %v1897 = vsel %vm1871, %v1864, %v1593
        %v1899 = vsel %vm1871, %v1866, %v1595
        %v1901 = vsel %vm1871, %v1868, %v1597
        %v1903 = vsel %vm1871, %v1870, %v1599
        %vm1904 = vcmask 195584
        %v1906 = vsel %vm1904, %v1873, %v1606
        %v1908 = vsel %vm1904, %v1875, %v1608
        %v1910 = vsel %vm1904, %v1877, %v1610
        %v1912 = vsel %vm1904, %v1879, %v1612
        %v1914 = vsel %vm1904, %v1881, %v1614
        %v1916 = vsel %vm1904, %v1883, %v1616
        %v1918 = vsel %vm1904, %v1885, %v1618
        %v1920 = vsel %vm1904, %v1887, %v1620
        %v1922 = vsel %vm1904, %v1889, %v1622
        %v1924 = vsel %vm1904, %v1891, %v1624
        %v1926 = vsel %vm1904, %v1893, %v1626
        %v1928 = vsel %vm1904, %v1895, %v1628
        %v1930 = vsel %vm1904, %v1897, %v1630
        %v1932 = vsel %vm1904, %v1899, %v1632
        %v1934 = vsel %vm1904, %v1901, %v1634
        %v1936 = vsel %vm1904, %v1903, %v1636
        %vm1937 = vcmask 261120
        %v1939 = vsel %vm1937, %v1906, %v1653
        %v1941 = vsel %vm1937, %v1908, %v1655
        %v1943 = vsel %vm1937, %v1910, %v1657
        %v1945 = vsel %vm1937, %v1912, %v1659
        %v1947 = vsel %vm1937, %v1914, %v1661
        %v1949 = vsel %vm1937, %v1916, %v1663
        %v1951 = vsel %vm1937, %v1918, %v1665
        %v1953 = vsel %vm1937, %v1920, %v1667
        %v1955 = vsel %vm1937, %v1922, %v1669
        %v1957 = vsel %vm1937, %v1924, %v1671
        %v1959 = vsel %vm1937, %v1926, %v1673
        %v1961 = vsel %vm1937, %v1928, %v1675
        %v1963 = vsel %vm1937, %v1930, %v1677
        %v1965 = vsel %vm1937, %v1932, %v1679
        %v1967 = vsel %vm1937, %v1934, %v1681
        %v1969 = vsel %vm1937, %v1936, %v1683
        %vm1970 = vcmask 326656
        %v1972 = vsel %vm1970, %v1939, %v1688
        %v1974 = vsel %vm1970, %v1941, %v1690
        %v1976 = vsel %vm1970, %v1943, %v1692
        %v1978 = vsel %vm1970, %v1945, %v1694
        %v1980 = vsel %vm1970, %v1947, %v1696
        %v1982 = vsel %vm1970, %v1949, %v1698
        %v1984 = vsel %vm1970, %v1951, %v1700
        %v1986 = vsel %vm1970, %v1953, %v1702
        %v1988 = vsel %vm1970, %v1955, %v1704
        %v1990 = vsel %vm1970, %v1957, %v1706
        %v1992 = vsel %vm1970, %v1959, %v1708
        %v1994 = vsel %vm1970, %v1961, %v1710
        %v1996 = vsel %vm1970, %v1963, %v1712
        %v1998 = vsel %vm1970, %v1965, %v1714
        %v2000 = vsel %vm1970, %v1967, %v1716
        %v2002 = vsel %vm1970, %v1969, %v1718
        %vm2003 = vcmask 392192
        %v2005 = vsel %vm2003, %v1972, %v1725
        %v2007 = vsel %vm2003, %v1974, %v1727
        %v2009 = vsel %vm2003, %v1976, %v1729
        %v2011 = vsel %vm2003, %v1978, %v1731
        %v2013 = vsel %vm2003, %v1980, %v1733
        %v2015 = vsel %vm2003, %v1982, %v1735
        %v2017 = vsel %vm2003, %v1984, %v1737
        %v2019 = vsel %vm2003, %v1986, %v1739
        %v2021 = vsel %vm2003, %v1988, %v1741
        %v2023 = vsel %vm2003, %v1990, %v1743
        %v2025 = vsel %vm2003, %v1992, %v1745
        %v2027 = vsel %vm2003, %v1994, %v1747
        %v2029 = vsel %vm2003, %v1996, %v1749
        %v2031 = vsel %vm2003, %v1998, %v1751
        %v2033 = vsel %vm2003, %v2000, %v1753
        %v2035 = vsel %vm2003, %v2002, %v1755
        %vm2036 = vcmask 457728
        %v2038 = vsel %vm2036, %v2005, %v1772
        %v2040 = vsel %vm2036, %v2007, %v1774
        %v2042 = vsel %vm2036, %v2009, %v1776
        %v2044 = vsel %vm2036, %v2011, %v1778
        %v2046 = vsel %vm2036, %v2013, %v1780
        %v2048 = vsel %vm2036, %v2015, %v1782
        %v2050 = vsel %vm2036, %v2017, %v1784
        %v2052 = vsel %vm2036, %v2019, %v1786
        %v2054 = vsel %vm2036, %v2021, %v1788
        %v2056 = vsel %vm2036, %v2023, %v1790
        %v2058 = vsel %vm2036, %v2025, %v1792
        %v2060 = vsel %vm2036, %v2027, %v1794
        %v2062 = vsel %vm2036, %v2029, %v1796
        %v2064 = vsel %vm2036, %v2031, %v1798
        %v2066 = vsel %vm2036, %v2033, %v1800
        %v2068 = vsel %vm2036, %v2035, %v1802
        %vm2069 = vcmask 523264
        %v2071 = vsel %vm2069, %v2038, %v1807
        %v2073 = vsel %vm2069, %v2040, %v1809
        %v2075 = vsel %vm2069, %v2042, %v1811
        %v2077 = vsel %vm2069, %v2044, %v1813
        %v2079 = vsel %vm2069, %v2046, %v1815
        %v2081 = vsel %vm2069, %v2048, %v1817
        %v2083 = vsel %vm2069, %v2050, %v1819
        %v2085 = vsel %vm2069, %v2052, %v1821
        %v2087 = vsel %vm2069, %v2054, %v1823
        %v2089 = vsel %vm2069, %v2056, %v1825
        %v2091 = vsel %vm2069, %v2058, %v1827
        %v2093 = vsel %vm2069, %v2060, %v1829
        %v2095 = vsel %vm2069, %v2062, %v1831
        %v2097 = vsel %vm2069, %v2064, %v1833
        %v2099 = vsel %vm2069, %v2066, %v1835
        %v2101 = vsel %vm2069, %v2068, %v1837
        %v2102 = vld [vmem:[%s2] sm:$0xf]
        %v2103 = vld [vmem:[%s2 + $0x4] sm:$0xf]
        %v2104 = vld [vmem:[%s2 + $0x8] sm:$0xf]
        %v2105 = vld [vmem:[%s2 + $0xc] sm:$0xf]
        %v2106 = vld [vmem:[%s2 + $0x10] sm:$0xf]
        %v2107 = vld [vmem:[%s2 + $0x14] sm:$0xf]
        %v2108 = vld [vmem:[%s2 + $0x18] sm:$0xf]
        %v2109 = vld [vmem:[%s2 + $0x1c] sm:$0xf]
        %v2110 = vld [vmem:[%s2 + $0x20] sm:$0xf]
        %v2120 = vunpack.c.l.b16 %v2102
        %v2121 = vunpack.c.l.b16 %v2103
        %v2122 = vunpack.c.l.b16 %v2104
        %v2123 = vunpack.c.l.b16 %v2105
        %v2124 = vunpack.c.l.b16 %v2106
        %v2125 = vunpack.c.l.b16 %v2107
        %v2126 = vunpack.c.l.b16 %v2108
        %v2127 = vunpack.c.l.b16 %v2109
        %v2128 = vunpack.c.l.b16 %v2110
        %v2129 = vpack.c.b16 %v2121, %v2120
        %v2130 = vpack.c.b16 %v2123, %v2122
        %v2131 = vpack.c.b16 %v2125, %v2124
        %v2132 = vpack.c.b16 %v2127, %v2126
        %v2133 = vpack.c.b16 %v2128, %v2128
        %vm2138 = vcmask 588800
        %v2139 = vsel %vm2138, %v2071, 0
        %v2141 = vsel %vm2138, %v2073, 0
        %v2143 = vsel %vm2138, %v2075, 0
        %v2145 = vsel %vm2138, %v2077, 0
        %v2147 = vsel %vm2138, %v2079, 0
        %v2149 = vsel %vm2138, %v2081, 0
        %v2151 = vsel %vm2138, %v2083, 0
        %v2153 = vsel %vm2138, %v2085, 0
        %v2155 = vsel %vm2138, %v2087, 0
        %v2157 = vsel %vm2138, %v2089, 0
        %v2159 = vsel %vm2138, %v2091, 0
        %v2161 = vsel %vm2138, %v2093, 0
        %v2163 = vsel %vm2138, %v2095, 0
        %v2165 = vsel %vm2138, %v2097, 0
        %v2167 = vsel %vm2138, %v2099, 0
        %v2169 = vsel %vm2138, %v2101, 0
        %vm2171 = vcmask 1043456
        %v2173 = vsel %vm2171, %v2133, 0
        %2175 = vmatprep.subr.bf16.mxu0 0
        %2176 = vmatpush1.bf16.msra.mxu0 %v2129
        %2177 = vmatprep.subr.bf16.mxu0 0
        %2178 = vmatpush1.bf16.msra.mxu0 %v2130
        %2179 = vmatprep.subr.bf16.mxu0 0
        %2180 = vmatpush1.bf16.msra.mxu0 %v2131
        %2181 = vmatprep.subr.bf16.mxu0 0
        %2182 = vmatpush1.bf16.msra.mxu0 %v2132
        %2183 = vmatprep.subr.bf16.mxu0 0
        %2184 = vmatpush1.bf16.msra.mxu0 %v2173
        %2185 = vmatprep.subr.bf16.mxu0 0
        %2186 = vmatpush1.bf16.msra.mxu0 0
        %2187 = vmatprep.subr.bf16.mxu0 0
        %2188 = vmatpush1.bf16.msra.mxu0 0
        %2189 = vmatprep.subr.bf16.mxu0 0
        %2190 = vmatpush1.bf16.msra.mxu0 0
        %2191 = vmatprep.subr.bf16.mxu0 0
        %2192 = vmatpush1.bf16.msra.mxu0 0
        %2193 = vmatprep.subr.bf16.mxu0 0
        %2194 = vmatpush1.bf16.msra.mxu0 0
        %2195 = vmatprep.subr.bf16.mxu0 0
        %2196 = vmatpush1.bf16.msra.mxu0 0
        %2197 = vmatprep.subr.bf16.mxu0 0
        %2198 = vmatpush1.bf16.msra.mxu0 0
        %2199 = vmatprep.subr.bf16.mxu0 0
        %2200 = vmatpush1.bf16.msra.mxu0 0
        %2201 = vmatprep.subr.bf16.mxu0 0
        %2202 = vmatpush1.bf16.msra.mxu0 0
        %2203 = vmatprep.subr.bf16.mxu0 0
        %2204 = vmatpush1.bf16.msra.mxu0 0
        %2205 = vmatprep.subr.bf16.mxu0 0
        %2206 = vmatpush1.bf16.msra.mxu0 0
        %2207 = vmatprep.mubr.bf16.mxu0 0
        %2208 = vmatmul.mubr.bf16.gmra.mrb[0].mxu0 %v2139
        %v2209 = vpop.f32.mrb[0].mxu0
        %v2210 = vadd.f32 0.0, %v2209
        %v2211 = vpop.f32.mrb[0].mxu0
        %v2212 = vpop.f32.mrb[0].mxu0
        %v2213 = vadd.f32 0.0, %v2212
        %v2214 = vpop.f32.mrb[0].mxu0
        %2215 = vmatprep.mubr.bf16.mxu0 0
        %2216 = vmatmul.mubr.bf16.gmra.mrb[0].mxu0 %v2141
        %v2217 = vpop.f32.mrb[0].mxu0
        %v2218 = vadd.f32 0.0, %v2217
        %v2219 = vpop.f32.mrb[0].mxu0
        %v2220 = vpop.f32.mrb[0].mxu0
        %v2221 = vadd.f32 0.0, %v2220
        %v2222 = vpop.f32.mrb[0].mxu0
        %2223 = vmatprep.mubr.bf16.mxu0 0
        %2224 = vmatmul.mubr.bf16.gmra.mrb[0].mxu0 %v2143
        %v2225 = vpop.f32.mrb[0].mxu0
        %v2226 = vadd.f32 0.0, %v2225
        %v2227 = vpop.f32.mrb[0].mxu0
        %v2228 = vpop.f32.mrb[0].mxu0
        %v2229 = vadd.f32 0.0, %v2228
        %v2230 = vpop.f32.mrb[0].mxu0
        %2231 = vmatprep.mubr.bf16.mxu0 0
        %2232 = vmatmul.mubr.bf16.gmra.mrb[0].mxu0 %v2145
        %v2233 = vpop.f32.mrb[0].mxu0
        %v2234 = vadd.f32 0.0, %v2233
        %v2235 = vpop.f32.mrb[0].mxu0
        %v2236 = vpop.f32.mrb[0].mxu0
        %v2237 = vadd.f32 0.0, %v2236
        %v2238 = vpop.f32.mrb[0].mxu0
        %2239 = vmatprep.mubr.bf16.mxu0 0
        %2240 = vmatmul.mubr.bf16.gmra.mrb[0].mxu0 %v2147
        %v2241 = vpop.f32.mrb[0].mxu0
        %v2242 = vadd.f32 0.0, %v2241
        %v2243 = vpop.f32.mrb[0].mxu0
        %v2244 = vpop.f32.mrb[0].mxu0
        %v2245 = vadd.f32 0.0, %v2244
        %v2246 = vpop.f32.mrb[0].mxu0
        %2247 = vmatprep.mubr.bf16.mxu0 0
        %2248 = vmatmul.mubr.bf16.gmra.mrb[0].mxu0 %v2149
        %v2249 = vpop.f32.mrb[0].mxu0
        %v2250 = vadd.f32 0.0, %v2249
        %v2251 = vpop.f32.mrb[0].mxu0
        %v2252 = vpop.f32.mrb[0].mxu0
        %v2253 = vadd.f32 0.0, %v2252
        %v2254 = vpop.f32.mrb[0].mxu0
        %2255 = vmatprep.mubr.bf16.mxu0 0
        %2256 = vmatmul.mubr.bf16.gmra.mrb[0].mxu0 %v2151
        %v2257 = vpop.f32.mrb[0].mxu0
        %v2258 = vadd.f32 0.0, %v2257
        %v2259 = vpop.f32.mrb[0].mxu0
        %v2260 = vpop.f32.mrb[0].mxu0
        %v2261 = vadd.f32 0.0, %v2260
        %v2262 = vpop.f32.mrb[0].mxu0
        %2263 = vmatprep.mubr.bf16.mxu0 0
        %2264 = vmatmul.mubr.bf16.gmra.mrb[0].mxu0 %v2153
        %v2265 = vpop.f32.mrb[0].mxu0
        %v2266 = vadd.f32 0.0, %v2265
        %v2267 = vpop.f32.mrb[0].mxu0
        %v2268 = vpop.f32.mrb[0].mxu0
        %v2269 = vadd.f32 0.0, %v2268
        %v2270 = vpop.f32.mrb[0].mxu0
        %2271 = vmatprep.mubr.bf16.mxu0 0
        %2272 = vmatmul.mubr.bf16.gmra.mrb[0].mxu0 %v2155
        %v2273 = vpop.f32.mrb[0].mxu0
        %v2274 = vadd.f32 0.0, %v2273
        %v2275 = vpop.f32.mrb[0].mxu0
        %v2276 = vpop.f32.mrb[0].mxu0
        %v2277 = vadd.f32 0.0, %v2276
        %v2278 = vpop.f32.mrb[0].mxu0
        %2279 = vmatprep.mubr.bf16.mxu0 0
        %2280 = vmatmul.mubr.bf16.gmra.mrb[0].mxu0 %v2157
        %v2281 = vpop.f32.mrb[0].mxu0
        %v2282 = vadd.f32 0.0, %v2281
        %v2283 = vpop.f32.mrb[0].mxu0
        %v2284 = vpop.f32.mrb[0].mxu0
        %v2285 = vadd.f32 0.0, %v2284
        %v2286 = vpop.f32.mrb[0].mxu0
        %2287 = vmatprep.mubr.bf16.mxu0 0
        %2288 = vmatmul.mubr.bf16.gmra.mrb[0].mxu0 %v2159
        %v2289 = vpop.f32.mrb[0].mxu0
        %v2290 = vadd.f32 0.0, %v2289
        %v2291 = vpop.f32.mrb[0].mxu0
        %v2292 = vpop.f32.mrb[0].mxu0
        %v2293 = vadd.f32 0.0, %v2292
        %v2294 = vpop.f32.mrb[0].mxu0
        %2295 = vmatprep.mubr.bf16.mxu0 0
        %2296 = vmatmul.mubr.bf16.gmra.mrb[0].mxu0 %v2161
        %v2297 = vpop.f32.mrb[0].mxu0
        %v2298 = vadd.f32 0.0, %v2297
        %v2299 = vpop.f32.mrb[0].mxu0
        %v2300 = vpop.f32.mrb[0].mxu0
        %v2301 = vadd.f32 0.0, %v2300
        %v2302 = vpop.f32.mrb[0].mxu0
        %2303 = vmatprep.mubr.bf16.mxu0 0
        %2304 = vmatmul.mubr.bf16.gmra.mrb[0].mxu0 %v2163
        %v2305 = vpop.f32.mrb[0].mxu0
        %v2306 = vadd.f32 0.0, %v2305
        %v2307 = vpop.f32.mrb[0].mxu0
        %v2308 = vpop.f32.mrb[0].mxu0
        %v2309 = vadd.f32 0.0, %v2308
        %v2310 = vpop.f32.mrb[0].mxu0
        %2311 = vmatprep.mubr.bf16.mxu0 0
        %2312 = vmatmul.mubr.bf16.gmra.mrb[0].mxu0 %v2165
        %v2313 = vpop.f32.mrb[0].mxu0
        %v2314 = vadd.f32 0.0, %v2313
        %v2315 = vpop.f32.mrb[0].mxu0
        %v2316 = vpop.f32.mrb[0].mxu0
        %v2317 = vadd.f32 0.0, %v2316
        %v2318 = vpop.f32.mrb[0].mxu0
        %2319 = vmatprep.mubr.bf16.mxu0 0
        %2320 = vmatmul.mubr.bf16.gmra.mrb[0].mxu0 %v2167
        %v2321 = vpop.f32.mrb[0].mxu0
        %v2322 = vadd.f32 0.0, %v2321
        %v2323 = vpop.f32.mrb[0].mxu0
        %v2324 = vpop.f32.mrb[0].mxu0
        %v2325 = vadd.f32 0.0, %v2324
        %v2326 = vpop.f32.mrb[0].mxu0
        %2327 = vmatprep.mubr.bf16.mxu0 0
        %2328 = vmatmul.mubr.bf16.gmra.mrb[0].mxu0 %v2169
        %v2329 = vpop.f32.mrb[0].mxu0
        %v2330 = vadd.f32 0.0, %v2329
        %v2331 = vpop.f32.mrb[0].mxu0
        %v2332 = vpop.f32.mrb[0].mxu0
        %v2333 = vadd.f32 0.0, %v2332
        %v2334 = vpop.f32.mrb[0].mxu0
        %2335 = vdwg.mxu0
        %v2336 = vpack.c.bf16 %v2213, %v2210
        %v2337 = vpack.c.bf16 %v2221, %v2218
        %v2338 = vpack.c.bf16 %v2229, %v2226
        %v2339 = vpack.c.bf16 %v2237, %v2234
        %v2340 = vpack.c.bf16 %v2245, %v2242
        %v2341 = vpack.c.bf16 %v2253, %v2250
        %v2342 = vpack.c.bf16 %v2261, %v2258
        %v2343 = vpack.c.bf16 %v2269, %v2266
        %v2344 = vpack.c.bf16 %v2277, %v2274
        %v2345 = vpack.c.bf16 %v2285, %v2282
        %v2346 = vpack.c.bf16 %v2293, %v2290
        %v2347 = vpack.c.bf16 %v2301, %v2298
        %v2348 = vpack.c.bf16 %v2309, %v2306
        %v2349 = vpack.c.bf16 %v2317, %v2314
        %v2350 = vpack.c.bf16 %v2325, %v2322
        %v2351 = vpack.c.bf16 %v2333, %v2330
        %v2368 = vunpack.c.l.b16 %v2336
        %v2369 = vunpack.c.h.b16 %v2336
        %v2370 = vunpack.c.l.b16 %v2337
        %v2371 = vunpack.c.h.b16 %v2337
        %v2372 = vunpack.c.l.b16 %v2338
        %v2373 = vunpack.c.h.b16 %v2338
        %v2374 = vunpack.c.l.b16 %v2339
        %v2375 = vunpack.c.h.b16 %v2339
        %v2376 = vunpack.c.l.b16 %v2340
        %v2377 = vunpack.c.h.b16 %v2340
        %v2378 = vunpack.c.l.b16 %v2341
        %v2379 = vunpack.c.h.b16 %v2341
        %v2380 = vunpack.c.l.b16 %v2342
        %v2381 = vunpack.c.h.b16 %v2342
        %v2382 = vunpack.c.l.b16 %v2343
        %v2383 = vunpack.c.h.b16 %v2343
        %v2384 = vunpack.c.l.b16 %v2344
        %v2385 = vunpack.c.h.b16 %v2344
        %v2386 = vunpack.c.l.b16 %v2345
        %v2387 = vunpack.c.h.b16 %v2345
        %v2388 = vunpack.c.l.b16 %v2346
        %v2389 = vunpack.c.h.b16 %v2346
        %v2390 = vunpack.c.l.b16 %v2347
        %v2391 = vunpack.c.h.b16 %v2347
        %v2392 = vunpack.c.l.b16 %v2348
        %v2393 = vunpack.c.h.b16 %v2348
        %v2394 = vunpack.c.l.b16 %v2349
        %v2395 = vunpack.c.h.b16 %v2349
        %v2396 = vunpack.c.l.b16 %v2350
        %v2397 = vunpack.c.h.b16 %v2350
        %v2398 = vunpack.c.l.b16 %v2351
        %v2399 = vunpack.c.h.b16 %v2351
        %v2400 = vpack.c.b16 %v2368, %v2368
        %v2401 = vpack.c.b16 %v2369, %v2369
        %v2402 = vpack.c.b16 %v2370, %v2370
        %v2403 = vpack.c.b16 %v2371, %v2371
        %v2404 = vpack.c.b16 %v2372, %v2372
        %v2405 = vpack.c.b16 %v2373, %v2373
        %v2406 = vpack.c.b16 %v2374, %v2374
        %v2407 = vpack.c.b16 %v2375, %v2375
        %v2408 = vpack.c.b16 %v2376, %v2376
        %v2409 = vpack.c.b16 %v2377, %v2377
        %v2410 = vpack.c.b16 %v2378, %v2378
        %v2411 = vpack.c.b16 %v2379, %v2379
        %v2412 = vpack.c.b16 %v2380, %v2380
        %v2413 = vpack.c.b16 %v2381, %v2381
        %v2414 = vpack.c.b16 %v2382, %v2382
        %v2415 = vpack.c.b16 %v2383, %v2383
        %v2416 = vpack.c.b16 %v2384, %v2384
        %v2417 = vpack.c.b16 %v2385, %v2385
        %v2418 = vpack.c.b16 %v2386, %v2386
        %v2419 = vpack.c.b16 %v2387, %v2387
        %v2420 = vpack.c.b16 %v2388, %v2388
        %v2421 = vpack.c.b16 %v2389, %v2389
        %v2422 = vpack.c.b16 %v2390, %v2390
        %v2423 = vpack.c.b16 %v2391, %v2391
        %v2424 = vpack.c.b16 %v2392, %v2392
        %v2425 = vpack.c.b16 %v2393, %v2393
        %v2426 = vpack.c.b16 %v2394, %v2394
        %v2427 = vpack.c.b16 %v2395, %v2395
        %v2428 = vpack.c.b16 %v2396, %v2396
        %v2429 = vpack.c.b16 %v2397, %v2397
        %v2430 = vpack.c.b16 %v2398, %v2398
        %v2431 = vpack.c.b16 %v2399, %v2399
        %vm2464 = vcmask 27648
        %2465 = vst.msk [vmem:[%s228] sm:$0xf] %vm2464, %v2400
        %2466 = vst.msk [vmem:[%s228 + $0x4] sm:$0xf] %vm2464, %v2401
        %2467 = vst.msk [vmem:[%s228 + $0x8] sm:$0xf] %vm2464, %v2402
        %2468 = vst.msk [vmem:[%s228 + $0xc] sm:$0xf] %vm2464, %v2403
        %2469 = vst.msk [vmem:[%s228 + $0x10] sm:$0xf] %vm2464, %v2404
        %2470 = vst.msk [vmem:[%s228 + $0x14] sm:$0xf] %vm2464, %v2405
        %2471 = vst.msk [vmem:[%s228 + $0x18] sm:$0xf] %vm2464, %v2406
        %2472 = vst.msk [vmem:[%s228 + $0x1c] sm:$0xf] %vm2464, %v2407
        %2473 = vst.msk [vmem:[%s228 + $0x20] sm:$0xf] %vm2464, %v2408
        %2474 = vst.msk [vmem:[%s228 + $0x24] sm:$0xf] %vm2464, %v2409
        %2475 = vst.msk [vmem:[%s228 + $0x28] sm:$0xf] %vm2464, %v2410
        %2476 = vst.msk [vmem:[%s228 + $0x2c] sm:$0xf] %vm2464, %v2411
        %2477 = vst.msk [vmem:[%s228 + $0x30] sm:$0xf] %vm2464, %v2412
        %2478 = vst.msk [vmem:[%s228 + $0x34] sm:$0xf] %vm2464, %v2413
        %2479 = vst.msk [vmem:[%s228 + $0x38] sm:$0xf] %vm2464, %v2414
        %2480 = vst.msk [vmem:[%s228 + $0x3c] sm:$0xf] %vm2464, %v2415
        %2481 = vst.msk [vmem:[%s228 + $0x40] sm:$0xf] %vm2464, %v2416
        %2482 = vst.msk [vmem:[%s228 + $0x44] sm:$0xf] %vm2464, %v2417
        %2483 = vst.msk [vmem:[%s228 + $0x48] sm:$0xf] %vm2464, %v2418
        %2484 = vst.msk [vmem:[%s228 + $0x4c] sm:$0xf] %vm2464, %v2419
        %2485 = vst.msk [vmem:[%s228 + $0x50] sm:$0xf] %vm2464, %v2420
        %2486 = vst.msk [vmem:[%s228 + $0x54] sm:$0xf] %vm2464, %v2421
        %2487 = vst.msk [vmem:[%s228 + $0x58] sm:$0xf] %vm2464, %v2422
        %2488 = vst.msk [vmem:[%s228 + $0x5c] sm:$0xf] %vm2464, %v2423
        %2489 = vst.msk [vmem:[%s228 + $0x60] sm:$0xf] %vm2464, %v2424
        %2490 = vst.msk [vmem:[%s228 + $0x64] sm:$0xf] %vm2464, %v2425
        %2491 = vst.msk [vmem:[%s228 + $0x68] sm:$0xf] %vm2464, %v2426
        %2492 = vst.msk [vmem:[%s228 + $0x6c] sm:$0xf] %vm2464, %v2427
        %2493 = vst.msk [vmem:[%s228 + $0x70] sm:$0xf] %vm2464, %v2428
        %2494 = vst.msk [vmem:[%s228 + $0x74] sm:$0xf] %vm2464, %v2429
        %2495 = vst.msk [vmem:[%s228 + $0x78] sm:$0xf] %vm2464, %v2430
        %2496 = vst.msk [vmem:[%s228 + $0x7c] sm:$0xf] %vm2464, %v2431
        %v2497 = vsel %vm542, %v2210, 0.0
        %v2498 = vsel %vm542, %v2213, 0.0
        %v2499 = vadd.f32 %v2497, %v2498
        %v2500 = vsel %vm542, %v2218, 0.0
        %v2501 = vadd.f32 %v2499, %v2500
        %v2502 = vsel %vm542, %v2221, 0.0
        %v2503 = vadd.f32 %v2501, %v2502
        %v2504 = vsel %vm542, %v2226, 0.0
        %v2505 = vadd.f32 %v2503, %v2504
        %v2506 = vsel %vm542, %v2229, 0.0
        %v2507 = vadd.f32 %v2505, %v2506
        %v2508 = vsel %vm542, %v2234, 0.0
        %v2509 = vadd.f32 %v2507, %v2508
        %v2510 = vsel %vm542, %v2237, 0.0
        %v2511 = vadd.f32 %v2509, %v2510
        %v2512 = vsel %vm542, %v2242, 0.0
        %v2513 = vadd.f32 %v2511, %v2512
        %v2514 = vsel %vm542, %v2245, 0.0
        %v2515 = vadd.f32 %v2513, %v2514
        %v2516 = vsel %vm542, %v2250, 0.0
        %v2517 = vadd.f32 %v2515, %v2516
        %v2518 = vsel %vm542, %v2253, 0.0
        %v2519 = vadd.f32 %v2517, %v2518
        %v2520 = vsel %vm542, %v2258, 0.0
        %v2521 = vadd.f32 %v2519, %v2520
        %v2522 = vsel %vm542, %v2261, 0.0
        %v2523 = vadd.f32 %v2521, %v2522
        %v2524 = vsel %vm542, %v2266, 0.0
        %v2525 = vadd.f32 %v2523, %v2524
        %v2526 = vsel %vm542, %v2269, 0.0
        %v2527 = vadd.f32 %v2525, %v2526
        %v2528 = vsel %vm542, %v2274, 0.0
        %v2529 = vadd.f32 %v2527, %v2528
        %v2530 = vsel %vm542, %v2277, 0.0
        %v2531 = vadd.f32 %v2529, %v2530
        %v2532 = vsel %vm542, %v2282, 0.0
        %v2533 = vadd.f32 %v2531, %v2532
        %v2534 = vsel %vm542, %v2285, 0.0
        %v2535 = vadd.f32 %v2533, %v2534
        %v2536 = vsel %vm542, %v2290, 0.0
        %v2537 = vadd.f32 %v2535, %v2536
        %v2538 = vsel %vm542, %v2293, 0.0
        %v2539 = vadd.f32 %v2537, %v2538
        %v2540 = vsel %vm542, %v2298, 0.0
        %v2541 = vadd.f32 %v2539, %v2540
        %v2542 = vsel %vm542, %v2301, 0.0
        %v2543 = vadd.f32 %v2541, %v2542
        %v2544 = vsel %vm542, %v2306, 0.0
        %v2545 = vadd.f32 %v2543, %v2544
        %v2546 = vsel %vm542, %v2309, 0.0
        %v2547 = vadd.f32 %v2545, %v2546
        %v2548 = vsel %vm542, %v2314, 0.0
        %v2549 = vadd.f32 %v2547, %v2548
        %v2550 = vsel %vm542, %v2317, 0.0
        %v2551 = vadd.f32 %v2549, %v2550
        %v2552 = vsel %vm542, %v2322, 0.0
        %v2553 = vadd.f32 %v2551, %v2552
        %v2554 = vsel %vm542, %v2325, 0.0
        %v2555 = vadd.f32 %v2553, %v2554
        %v2556 = vsel %vm542, %v2330, 0.0
        %v2557 = vadd.f32 %v2555, %v2556
        %v2558 = vsel %vm542, %v2333, 0.0
        %v2559 = vadd.f32 %v2557, %v2558
        %v2560 = vrot.slane %v2559, 4
        %v2561 = vadd.f32 %v2559, %v2560
        %v2562 = vrot.slane %v2561, 2
        %v2563 = vadd.f32 %v2561, %v2562
        %v2564 = vrot.slane %v2563, 1
        %v2565 = vadd.f32 %v2563, %v2564
        %v2566 = vmul.f32 %v2210, %v2210
        %v2567 = vmul.f32 %v2213, %v2213
        %v2568 = vmul.f32 %v2218, %v2218
        %v2569 = vmul.f32 %v2221, %v2221
        %v2570 = vmul.f32 %v2226, %v2226
        %v2571 = vmul.f32 %v2229, %v2229
        %v2572 = vmul.f32 %v2234, %v2234
        %v2573 = vmul.f32 %v2237, %v2237
        %v2574 = vmul.f32 %v2242, %v2242
        %v2575 = vmul.f32 %v2245, %v2245
        %v2576 = vmul.f32 %v2250, %v2250
        %v2577 = vmul.f32 %v2253, %v2253
        %v2578 = vmul.f32 %v2258, %v2258
        %v2579 = vmul.f32 %v2261, %v2261
        %v2580 = vmul.f32 %v2266, %v2266
        %v2581 = vmul.f32 %v2269, %v2269
        %v2582 = vmul.f32 %v2274, %v2274
        %v2583 = vmul.f32 %v2277, %v2277
        %v2584 = vmul.f32 %v2282, %v2282
        %v2585 = vmul.f32 %v2285, %v2285
        %v2586 = vmul.f32 %v2290, %v2290
        %v2587 = vmul.f32 %v2293, %v2293
        %v2588 = vmul.f32 %v2298, %v2298
        %v2589 = vmul.f32 %v2301, %v2301
        %v2590 = vmul.f32 %v2306, %v2306
        %v2591 = vmul.f32 %v2309, %v2309
        %v2592 = vmul.f32 %v2314, %v2314
        %v2593 = vmul.f32 %v2317, %v2317
        %v2594 = vmul.f32 %v2322, %v2322
        %v2595 = vmul.f32 %v2325, %v2325
        %v2596 = vmul.f32 %v2330, %v2330
        %v2597 = vmul.f32 %v2333, %v2333
        %v2598 = vsel %vm542, %v2566, 0.0
        %v2599 = vsel %vm542, %v2567, 0.0
        %v2600 = vadd.f32 %v2598, %v2599
        %v2601 = vsel %vm542, %v2568, 0.0
        %v2602 = vadd.f32 %v2600, %v2601
        %v2603 = vsel %vm542, %v2569, 0.0
        %v2604 = vadd.f32 %v2602, %v2603
        %v2605 = vsel %vm542, %v2570, 0.0
        %v2606 = vadd.f32 %v2604, %v2605
        %v2607 = vsel %vm542, %v2571, 0.0
        %v2608 = vadd.f32 %v2606, %v2607
        %v2609 = vsel %vm542, %v2572, 0.0
        %v2610 = vadd.f32 %v2608, %v2609
        %v2611 = vsel %vm542, %v2573, 0.0
        %v2612 = vadd.f32 %v2610, %v2611
        %v2613 = vsel %vm542, %v2574, 0.0
        %v2614 = vadd.f32 %v2612, %v2613
        %v2615 = vsel %vm542, %v2575, 0.0
        %v2616 = vadd.f32 %v2614, %v2615
        %v2617 = vsel %vm542, %v2576, 0.0
        %v2618 = vadd.f32 %v2616, %v2617
        %v2619 = vsel %vm542, %v2577, 0.0
        %v2620 = vadd.f32 %v2618, %v2619
        %v2621 = vsel %vm542, %v2578, 0.0
        %v2622 = vadd.f32 %v2620, %v2621
        %v2623 = vsel %vm542, %v2579, 0.0
        %v2624 = vadd.f32 %v2622, %v2623
        %v2625 = vsel %vm542, %v2580, 0.0
        %v2626 = vadd.f32 %v2624, %v2625
        %v2627 = vsel %vm542, %v2581, 0.0
        %v2628 = vadd.f32 %v2626, %v2627
        %v2629 = vsel %vm542, %v2582, 0.0
        %v2630 = vadd.f32 %v2628, %v2629
        %v2631 = vsel %vm542, %v2583, 0.0
        %v2632 = vadd.f32 %v2630, %v2631
        %v2633 = vsel %vm542, %v2584, 0.0
        %v2634 = vadd.f32 %v2632, %v2633
        %v2635 = vsel %vm542, %v2585, 0.0
        %v2636 = vadd.f32 %v2634, %v2635
        %v2637 = vsel %vm542, %v2586, 0.0
        %v2638 = vadd.f32 %v2636, %v2637
        %v2639 = vsel %vm542, %v2587, 0.0
        %v2640 = vadd.f32 %v2638, %v2639
        %v2641 = vsel %vm542, %v2588, 0.0
        %v2642 = vadd.f32 %v2640, %v2641
        %v2643 = vsel %vm542, %v2589, 0.0
        %v2644 = vadd.f32 %v2642, %v2643
        %v2645 = vsel %vm542, %v2590, 0.0
        %v2646 = vadd.f32 %v2644, %v2645
        %v2647 = vsel %vm542, %v2591, 0.0
        %v2648 = vadd.f32 %v2646, %v2647
        %v2649 = vsel %vm542, %v2592, 0.0
        %v2650 = vadd.f32 %v2648, %v2649
        %v2651 = vsel %vm542, %v2593, 0.0
        %v2652 = vadd.f32 %v2650, %v2651
        %v2653 = vsel %vm542, %v2594, 0.0
        %v2654 = vadd.f32 %v2652, %v2653
        %v2655 = vsel %vm542, %v2595, 0.0
        %v2656 = vadd.f32 %v2654, %v2655
        %v2657 = vsel %vm542, %v2596, 0.0
        %v2658 = vadd.f32 %v2656, %v2657
        %v2659 = vsel %vm542, %v2597, 0.0
        %v2660 = vadd.f32 %v2658, %v2659
        %v2661 = vrot.slane %v2660, 4
        %v2662 = vadd.f32 %v2660, %v2661
        %v2663 = vrot.slane %v2662, 2
        %v2664 = vadd.f32 %v2662, %v2663
        %v2665 = vrot.slane %v2664, 1
        %v2666 = vadd.f32 %v2664, %v2665
        %vm2667 = vcmask 1040384
        %v2668 = vsel %vm2667, %v2565, %v2666
        %vm2669 = vcmask 25600
        %2670 = vst.msk [vmem:[%s213] sm:$0x3] %vm2669, %v2668
        %p2671 = scmp.lt.s32.totalorder %s19, 1
        %s2672 = scalar_select %p2671, %s19, 1
        %s2673 = smul.addr %s2672, 32
        %s2674 = smul.addr %s2673, 4
        %s2675 = scalar_lea.vmem %s3, %s2674
        %s2676 = sand.u32 %s126, 1
        %s2677 = scalar_lea.sflag [#allocation4], %s2676
        %s2678 = sand.u32 %s126, 1
        %s2679 = smul.addr %s2678, 2
        %s2680 = scalar_lea.vmem [#allocation3], %s2679
        // Predicated region
        $region33: #{tpu_custom_call.1} parent=31 // pred_check
          %p2681 = pneg %p110
        $region34: #{tpu_custom_call.1} parent=31 // pred_check_branch
          %2683 = sbr.rel (%p2681) target = $region36
        $region35: #{tpu_custom_call.1} parent=31 // pred_region
          _
        $region36: #{tpu_custom_call.1} parent=31 // pred_fallthru
          _
        // Predicated region
        $region37: #{tpu_custom_call.1} parent=31 // pred_check
          %p2684 = pneg %p136
        $region38: #{tpu_custom_call.1} parent=31 // pred_check_branch
          %2686 = sbr.rel (%p2684) target = $region40
        $region39: #{tpu_custom_call.1} parent=31 // pred_region
          %s2688 = ssub.s32 32, 32
          %2689 = vsyncadd %s2677, %s2688
          %s2690 = smul.addr %s19, 32
          %s2691 = scalar_lea.hbm %s4, %s2690
          %s2693 = sshll.u32 %s2680, 4
          %s2694 = int_to_ptr.vmem [resolvable:$true] %s2693
          %2696 = dma.vmem_to_hbm [thread:$0]  %s2694, 32, %s2691, %s2677
        $region40: #{tpu_custom_call.1} parent=31 // pred_fallthru
          _
      $region32: #{tpu_custom_call.1} parent=5 // pred_fallthru
        _
      %p2697 = scmp.le.s32.totalorder 2, %s14
      // Predicated region
      $region41: #{tpu_custom_call.1} parent=5 // pred_check
        %p2698 = pneg %p2697
      $region42: #{tpu_custom_call.1} parent=5 // pred_check_branch
        %2700 = sbr.rel (%p2698) target = $region44
      $region43: #{tpu_custom_call.1} parent=5 // pred_region
        %s2701 = ssub.s32 %s14, 2
        // Predicated region
        $region45: #{tpu_custom_call.1} parent=43 // pred_check
          %p2702 = pneg %p116
        $region46: #{tpu_custom_call.1} parent=43 // pred_check_branch
          %2704 = sbr.rel (%p2702) target = $region48
        $region47: #{tpu_custom_call.1} parent=43 // pred_region
          %p2705 = scmp.lt.s32.totalorder %s20, 1
          %s2706 = scalar_select %p2705, %s20, 1
          %s2707 = smul.addr %s2706, 32
          %s2708 = smul.addr %s2707, 4
          %s2709 = scalar_lea.vmem %s3, %s2708
        $region48: #{tpu_custom_call.1} parent=43 // pred_fallthru
          _
        // Predicated region
        $region49: #{tpu_custom_call.1} parent=43 // pred_check
          %p2710 = pneg %p142
        $region50: #{tpu_custom_call.1} parent=43 // pred_check_branch
          %2712 = sbr.rel (%p2710) target = $region52
        $region51: #{tpu_custom_call.1} parent=43 // pred_region
          %s2713 = sand.u32 %s127, 1
          %s2714 = scalar_lea.sflag [#allocation4], %s2713
          %s2715 = sand.u32 %s127, 1
          %s2716 = smul.addr %s2715, 2
          %s2717 = scalar_lea.vmem [#allocation3], %s2716
          %2718 = dma.done %s2714, 32
        $region52: #{tpu_custom_call.1} parent=43 // pred_fallthru
          _
      $region44: #{tpu_custom_call.1} parent=5 // pred_fallthru
        _
    $region6: #{tpu_custom_call.1} parent=1 // loop_footer
      %s18 = sadd.s32 1, %s14
    $region7: #{tpu_custom_call.1} parent=1 // loop_footer_branch
      %13 = sbr.rel target = $region3
    $region8: #{tpu_custom_call.1} parent=1 // loop_exit
      _
    %2719 = vsyncpa [#allocation4], 1
    %s2720 = scalar_lea.sflag [#allocation4], 1
    %2721 = vsyncpa %s2720, 1

</llo_original>
